<compile_context>
chip_gen: v7x
topology: tpu7x:2x2x1
jax: 0.10.0
libtpu: 0.0.40
codegen_flags: <defaults>
</compile_context>

<pallas_src>
import functools

import jax
import jax.numpy as jnp
from jax.experimental import pallas as pl
from jax.experimental.pallas import tpu as pltpu

# ----------------------------------------------------------------------------
# Tokenizer glue (deterministic replacement for multimolecule RnaTokenizer)
# ----------------------------------------------------------------------------
RINALMO_MASK_TOKEN = "-"

rna_min_restype_num = 21
rna_restypes = ["A", "G", "C", "U"] + ["X"]
dna_min_restype_num = 26
dna_restypes = ["A", "G", "C", "T"] + ["X"]

PAD_ID, CLS_ID, EOS_ID, UNK_ID, MASK_ID = 0, 1, 2, 3, 4
CHAR_TO_TOKEN = {"A": 5, "C": 6, "G": 7, "U": 8, "T": 9, "N": 10,
                 "X": UNK_ID, RINALMO_MASK_TOKEN: MASK_ID}


def build_na_id_lut(max_id: int = 32) -> jnp.ndarray:
    """na residue index -> token id lookup table (composition of both maps)."""
    lut = []
    for i in range(max_id):
        if dna_min_restype_num <= i < dna_min_restype_num + len(dna_restypes):
            ch = dna_restypes[i - dna_min_restype_num]
        elif rna_min_restype_num <= i < rna_min_restype_num + len(rna_restypes):
            ch = rna_restypes[i - rna_min_restype_num]
        else:
            ch = "X"
        lut.append(CHAR_TO_TOKEN.get(ch, UNK_ID))
    return jnp.asarray(lut, dtype=jnp.int32)


def tokenize(na_ids: jnp.ndarray, lut: jnp.ndarray) -> jnp.ndarray:
    """(b, n) residue ids -> (b, n+2) token ids with CLS / EOS added."""
    b, _ = na_ids.shape
    safe = jnp.clip(na_ids, 0, lut.shape[0] - 1)
    tok = jnp.where(na_ids == -1, MASK_ID, lut[safe]).astype(jnp.int32)
    cls = jnp.full((b, 1), CLS_ID, jnp.int32)
    eos = jnp.full((b, 1), EOS_ID, jnp.int32)
    return jnp.concatenate([cls, tok, eos], axis=1)


# ----------------------------------------------------------------------------
# Small helpers
# ----------------------------------------------------------------------------
# > 32 MiB scoped default (lets v5e/v6e take bigger tiles), < v7x 64 MiB physical.
_VMEM_LIMIT_BYTES = 40 * 1024 * 1024


def _cparams(dims):
    return pltpu.CompilerParams(dimension_semantics=dims,
                                vmem_limit_bytes=_VMEM_LIMIT_BYTES)


def _round_up(x: int, m: int) -> int:
    return ((x + m - 1) // m) * m


def _tile(dim: int, target: int) -> int:
    """Largest 128-aligned divisor of `dim` that is <= target (or the full dim)."""
    if dim <= target:
        return dim
    t = (target // 128) * 128
    while t >= 128:
        if dim % t == 0:
            return t
        t -= 128
    # TODO(synk): cdiv grid + masked remainder tile for ragged (non-128) dims.
    return dim


# ----------------------------------------------------------------------------
# Fused LayerNorm -> Q/K/V projection  (LN cached in VMEM scratch at j == 0)
# ----------------------------------------------------------------------------
def _ln_qkv_kernel(x_ref, g_ref, b_ref, wq_ref, wk_ref, wv_ref,
                   bq_ref, bk_ref, bv_ref, q_ref, k_ref, v_ref, h_sc, *, eps):
    @pl.when(pl.program_id(1) == 0)
    def _():
        x = x_ref[...].astype(jnp.float32)
        mu = jnp.mean(x, axis=-1, keepdims=True)
        var = jnp.mean(jnp.square(x - mu), axis=-1, keepdims=True)
        h = (x - mu) * jax.lax.rsqrt(var + eps) * g_ref[...] + b_ref[...]
        h_sc[...] = h.astype(jnp.bfloat16)

    h = h_sc[...]
    q_ref[...] = (jnp.dot(h, wq_ref[...], preferred_element_type=jnp.float32)
                  + bq_ref[...]).astype(q_ref.dtype)
    k_ref[...] = (jnp.dot(h, wk_ref[...], preferred_element_type=jnp.float32)
                  + bk_ref[...]).astype(k_ref.dtype)
    v_ref[...] = (jnp.dot(h, wv_ref[...], preferred_element_type=jnp.float32)
                  + bv_ref[...]).astype(v_ref.dtype)


def pallas_ln_qkv(x, gamma, beta, wq, wk, wv, bq, bk, bv,
                  *, eps=1e-5, tm=256, tn=256):
    m, d = x.shape
    tm, tn = _tile(m, tm), _tile(d, tn)
    kern = functools.partial(_ln_qkv_kernel, eps=eps)
    out = jax.ShapeDtypeStruct((m, d), jnp.bfloat16)
    w_spec = pl.BlockSpec((d, tn), lambda i, j: (0, j))
    b_spec = pl.BlockSpec((1, tn), lambda i, j: (0, j))
    o_spec = pl.BlockSpec((tm, tn), lambda i, j: (i, j))
    return pl.pallas_call(
        kern,
        out_shape=(out, out, out),
        grid=(m // tm, d // tn),
        in_specs=[
            pl.BlockSpec((tm, d), lambda i, j: (i, 0)),
            pl.BlockSpec((1, d), lambda i, j: (0, 0)),
            pl.BlockSpec((1, d), lambda i, j: (0, 0)),
            w_spec, w_spec, w_spec, b_spec, b_spec, b_spec,
        ],
        out_specs=(o_spec, o_spec, o_spec),
        scratch_shapes=[pltpu.VMEM((tm, d), jnp.bfloat16)],
        # j must be 'arbitrary' so the LN scratch computed at j==0 is valid.
        compiler_params=_cparams(("parallel", "arbitrary")),
    )(x, gamma, beta, wq, wk, wv, bq, bk, bv)


# ----------------------------------------------------------------------------
# Fused LayerNorm -> SwiGLU (gate/up GEMMs + SiLU), LN cached at j == 0
# ----------------------------------------------------------------------------
def _ln_swiglu_kernel(x_ref, g_ref, b_ref, w1_ref, b1_ref, w3_ref, b3_ref,
                      o_ref, h_sc, *, eps):
    @pl.when(pl.program_id(1) == 0)
    def _():
        x = x_ref[...].astype(jnp.float32)
        mu = jnp.mean(x, axis=-1, keepdims=True)
        var = jnp.mean(jnp.square(x - mu), axis=-1, keepdims=True)
        h = (x - mu) * jax.lax.rsqrt(var + eps) * g_ref[...] + b_ref[...]
        h_sc[...] = h.astype(jnp.bfloat16)

    h = h_sc[...]
    gate = jnp.dot(h, w1_ref[...], preferred_element_type=jnp.float32) + b1_ref[...]
    up = jnp.dot(h, w3_ref[...], preferred_element_type=jnp.float32) + b3_ref[...]
    o_ref[...] = (gate * jax.nn.sigmoid(gate) * up).astype(o_ref.dtype)   # f32 math


def pallas_ln_swiglu(x, gamma, beta, w1, b1, w3, b3, *, eps=1e-5, tm=256, tf=512):
    m, d = x.shape
    _, f = w1.shape
    tm, tf = _tile(m, tm), _tile(f, tf)
    kern = functools.partial(_ln_swiglu_kernel, eps=eps)
    return pl.pallas_call(
        kern,
        out_shape=jax.ShapeDtypeStruct((m, f), jnp.bfloat16),
        grid=(m // tm, f // tf),
        in_specs=[
            pl.BlockSpec((tm, d), lambda i, j: (i, 0)),
            pl.BlockSpec((1, d), lambda i, j: (0, 0)),
            pl.BlockSpec((1, d), lambda i, j: (0, 0)),
            pl.BlockSpec((d, tf), lambda i, j: (0, j)),
            pl.BlockSpec((1, tf), lambda i, j: (0, j)),
            pl.BlockSpec((d, tf), lambda i, j: (0, j)),
            pl.BlockSpec((1, tf), lambda i, j: (0, j)),
        ],
        out_specs=pl.BlockSpec((tm, tf), lambda i, j: (i, j)),
        scratch_shapes=[pltpu.VMEM((tm, d), jnp.bfloat16)],
        compiler_params=_cparams(("parallel", "arbitrary")),
    )(x, gamma, beta, w1, b1, w3, b3)


# ----------------------------------------------------------------------------
# Tiled GEMM with K reduction + bias + residual add (f32 VMEM accumulator)
# ----------------------------------------------------------------------------
def _linear_residual_kernel(x_ref, w_ref, b_ref, res_ref, o_ref, acc_ref):
    @pl.when(pl.program_id(2) == 0)
    def _():
        acc_ref[...] = jnp.zeros_like(acc_ref)

    acc_ref[...] += jnp.dot(x_ref[...], w_ref[...],
                            preferred_element_type=jnp.float32)

    @pl.when(pl.program_id(2) == pl.num_programs(2) - 1)
    def _():
        o_ref[...] = acc_ref[...] + b_ref[...] + res_ref[...]


def pallas_linear_residual(x, w, b, res, *, tm=256, tn=256, tk=512):
    m, k = x.shape
    _, n = w.shape
    tm, tn, tk = _tile(m, tm), _tile(n, tn), _tile(k, tk)
    return pl.pallas_call(
        _linear_residual_kernel,
        out_shape=jax.ShapeDtypeStruct((m, n), jnp.float32),
        grid=(m // tm, n // tn, k // tk),
        in_specs=[
            pl.BlockSpec((tm, tk), lambda i, j, kk: (i, kk)),
            pl.BlockSpec((tk, tn), lambda i, j, kk: (kk, j)),
            pl.BlockSpec((1, tn), lambda i, j, kk: (0, j)),
            pl.BlockSpec((tm, tn), lambda i, j, kk: (i, j)),
        ],
        out_specs=pl.BlockSpec((tm, tn), lambda i, j, kk: (i, j)),
        scratch_shapes=[pltpu.VMEM((tm, tn), jnp.float32)],
        compiler_params=_cparams(("parallel", "parallel", "arbitrary")),
    )(x, w, b, res)


# ----------------------------------------------------------------------------
# Flash attention with fused RoPE (online softmax over KV tiles)
# ----------------------------------------------------------------------------
def _flash_attn_kernel(q_ref, k_ref, v_ref, cq_ref, sq_ref, ck_ref, sk_ref,
                       bias_ref, o_ref, qrot_sc, m_sc, l_sc, acc_sc,
                       *, heads, dh, scale):
    half = dh // 2
    ki = pl.program_id(2)

    @pl.when(ki == 0)
    def _():
        m_sc[...] = jnp.full_like(m_sc, -jnp.inf)
        l_sc[...] = jnp.zeros_like(l_sc)
        acc_sc[...] = jnp.zeros_like(acc_sc)
        # RoPE on q (f32), cached for all KV steps of this (batch, q-tile).
        q = q_ref[0].astype(jnp.float32)                  # (tq, d), lane-dense
        cq, sq = cq_ref[...], sq_ref[...]                 # (tq, half)
        for hh in range(heads):
            a = hh * dh
            q1 = q[:, a:a + half]
            q2 = q[:, a + half:a + dh]
            qrot_sc[hh] = jnp.concatenate(
                [q1 * cq - q2 * sq, q1 * sq + q2 * cq], axis=-1
            ).astype(jnp.bfloat16)

    k = k_ref[0].astype(jnp.float32)                      # (tkv, d)
    v = v_ref[0]                                          # (tkv, d) bf16
    ck, sk = ck_ref[...], sk_ref[...]                     # (tkv, half)
    bias = bias_ref[0]                                    # (1, tkv) key-pad bias

    for hh in range(heads):
        a = hh * dh
        k1 = k[:, a:a + half]
        k2 = k[:, a + half:a + dh]
        k_rot = jnp.concatenate([k1 * ck - k2 * sk, k1 * sk + k2 * ck],
                                axis=-1).astype(jnp.bfloat16)          # (tkv, dh)
        s = jax.lax.dot_general(qrot_sc[hh], k_rot, (((1,), (1,)), ((), ())),
                                preferred_element_type=jnp.float32)    # (tq, tkv)
        s = s * scale + bias
        m_prev = m_sc[hh]                                              # (tq, 1)
        m_new = jnp.maximum(m_prev, jnp.max(s, axis=-1, keepdims=True))
        alpha = jnp.exp(m_prev - m_new)
        p = jnp.exp(s - m_new)
        l_sc[hh] = alpha * l_sc[hh] + jnp.sum(p, axis=-1, keepdims=True)
        acc_sc[hh] = alpha * acc_sc[hh] + jnp.dot(
            p.astype(jnp.bfloat16), v[:, a:a + dh],
            preferred_element_type=jnp.float32)                        # (tq, dh)
        m_sc[hh] = m_new

    @pl.when(ki == pl.num_programs(2) - 1)
    def _():
        outs = []
        for hh in range(heads):
            inv_l = pl.reciprocal(l_sc[hh], approx=True)
            outs.append(acc_sc[hh] * inv_l)
        # Single lane-dense (tq, d) store.
        o_ref[0] = jnp.concatenate(outs, axis=-1).astype(o_ref.dtype)


def pallas_flash_attention(q, k, v, cos_t, sin_t, bias, *, heads, scale,
                           tq=256, tkv=256):
    b, s, d = q.shape
    dh = d // heads
    half = dh // 2
    tq, tkv = _tile(s, tq), _tile(s, tkv)
    kern = functools.partial(_flash_attn_kernel, heads=heads, dh=dh, scale=scale)
    return pl.pallas_call(
        kern,
        out_shape=jax.ShapeDtypeStruct((b, s, d), jnp.bfloat16),
        grid=(b, s // tq, s // tkv),
        in_specs=[
            pl.BlockSpec((1, tq, d), lambda bi, qi, ki: (bi, qi, 0)),
            pl.BlockSpec((1, tkv, d), lambda bi, qi, ki: (bi, ki, 0)),
            pl.BlockSpec((1, tkv, d), lambda bi, qi, ki: (bi, ki, 0)),
            pl.BlockSpec((tq, half), lambda bi, qi, ki: (qi, 0)),
            pl.BlockSpec((tq, half), lambda bi, qi, ki: (qi, 0)),
            pl.BlockSpec((tkv, half), lambda bi, qi, ki: (ki, 0)),
            pl.BlockSpec((tkv, half), lambda bi, qi, ki: (ki, 0)),
            pl.BlockSpec((1, 1, tkv), lambda bi, qi, ki: (bi, 0, ki)),
        ],
        out_specs=pl.BlockSpec((1, tq, d), lambda bi, qi, ki: (bi, qi, 0)),
        scratch_shapes=[
            pltpu.VMEM((heads, tq, dh), jnp.bfloat16),   # RoPE'd q cache
            pltpu.VMEM((heads, tq, 1), jnp.float32),     # running max m
            pltpu.VMEM((heads, tq, 1), jnp.float32),     # running denom l
            pltpu.VMEM((heads, tq, dh), jnp.float32),    # output accumulator
        ],
        compiler_params=_cparams(("parallel", "parallel", "arbitrary")),
    )(q, k, v, cos_t, sin_t, cos_t, sin_t, bias)


# ----------------------------------------------------------------------------
# Final LayerNorm
# ----------------------------------------------------------------------------
def _layernorm_kernel(x_ref, g_ref, b_ref, o_ref, *, eps):
    x = x_ref[...].astype(jnp.float32)
    mu = jnp.mean(x, axis=-1, keepdims=True)
    var = jnp.mean(jnp.square(x - mu), axis=-1, keepdims=True)
    o_ref[...] = (x - mu) * jax.lax.rsqrt(var + eps) * g_ref[...] + b_ref[...]


def pallas_layernorm(x, gamma, beta, *, eps=1e-5, tm=256):
    m, d = x.shape
    tm = _tile(m, tm)
    kern = functools.partial(_layernorm_kernel, eps=eps)
    return pl.pallas_call(
        kern,
        out_shape=jax.ShapeDtypeStruct((m, d), jnp.float32),
        grid=(m // tm,),
        in_specs=[
            pl.BlockSpec((tm, d), lambda i: (i, 0)),
            pl.BlockSpec((1, d), lambda i: (0, 0)),
            pl.BlockSpec((1, d), lambda i: (0, 0)),
        ],
        out_specs=pl.BlockSpec((tm, d), lambda i: (i, 0)),
        compiler_params=_cparams(("parallel",)),
    )(x, gamma, beta)


# ----------------------------------------------------------------------------
# Parameters (deterministic synthetic init; weights bf16, LN/bias f32)
# ----------------------------------------------------------------------------
def init_params(key, vocab, d, heads, ffn, layers):
    def nrm_bf16(k, shape, scale=0.02):
        return (scale * jax.random.normal(k, shape, jnp.float32)).astype(jnp.bfloat16)

    keys = jax.random.split(key, 1 + layers)
    params = {
        "embed": (0.02 * jax.random.normal(keys[0], (vocab, d))).astype(jnp.float32),
        "lnf_g": jnp.ones((1, d), jnp.float32),
        "lnf_b": jnp.zeros((1, d), jnp.float32),
        "layers": [],
    }
    for li in range(layers):
        lk = jax.random.split(keys[1 + li], 7)
        params["layers"].append({
            "ln1_g": jnp.ones((1, d), jnp.float32),
            "ln1_b": jnp.zeros((1, d), jnp.float32),
            "wq": nrm_bf16(lk[0], (d, d)), "bq": jnp.zeros((1, d), jnp.float32),
            "wk": nrm_bf16(lk[1], (d, d)), "bk": jnp.zeros((1, d), jnp.float32),
            "wv": nrm_bf16(lk[2], (d, d)), "bv": jnp.zeros((1, d), jnp.float32),
            "wo": nrm_bf16(lk[3], (d, d)), "bo": jnp.zeros((1, d), jnp.float32),
            "ln2_g": jnp.ones((1, d), jnp.float32),
            "ln2_b": jnp.zeros((1, d), jnp.float32),
            "w1": nrm_bf16(lk[4], (d, ffn)), "b1": jnp.zeros((1, ffn), jnp.float32),
            "w3": nrm_bf16(lk[5], (d, ffn)), "b3": jnp.zeros((1, ffn), jnp.float32),
            "w2": nrm_bf16(lk[6], (ffn, d)), "b2": jnp.zeros((1, d), jnp.float32),
        })
    return params


# ----------------------------------------------------------------------------
# Forward (mirrors RiNALMoWrapper.forward: (b, n) int ids -> (b, n, d) floats)
# ----------------------------------------------------------------------------
def rinalmo_forward(na_ids, params, cfg):
    b, n = na_ids.shape
    d, heads = cfg["d"], cfg["heads"]
    dh = d // heads
    half = dh // 2

    lut = build_na_id_lut()
    token_ids = tokenize(na_ids, lut)                 # (b, n+2): [CLS] seq [EOS]
    s = n + 2
    # Pad to a lane-friendly multiple of 128; pad keys are neutralized by the
    # additive mask bias and pad rows never reach the output slice.
    s_pad = _round_up(s, 128)
    token_ids = jnp.pad(token_ids, ((0, 0), (0, s_pad - s)),
                        constant_values=PAD_ID)
    key_valid = jnp.arange(s_pad) < s
    bias = jnp.where(key_valid, 0.0, -1e9).astype(jnp.float32)
    bias = jnp.broadcast_to(bias[None, None, :], (b, 1, s_pad))   # (b, 1, s_pad)

    x = params["embed"][token_ids]                    # (b, s_pad, d) f32 residual
    M = b * s_pad

    # RoPE tables (hoisted out of the layer loop), rotate-half convention.
    # TODO(synk): verify half-split rope convention / QKV ordering against the
    #             real multimolecule/rinalmo checkpoint layout.
    pos = jnp.arange(s_pad, dtype=jnp.float32)
    inv_freq = 1.0 / (10000.0 ** (jnp.arange(half, dtype=jnp.float32) / half))
    ang = pos[:, None] * inv_freq[None, :]            # (s_pad, half)
    cos_t, sin_t = jnp.cos(ang), jnp.sin(ang)

    scale = 1.0 / (dh ** 0.5)

    for lp in params["layers"]:
        # --- attention block: fused LN1 + Q/K/V projections, flash attention
        #     with fused RoPE, fused output-proj + residual add ---
        x2d = x.reshape(M, d)
        q2d, k2d, v2d = pallas_ln_qkv(
            x2d, lp["ln1_g"], lp["ln1_b"],
            lp["wq"], lp["wk"], lp["wv"], lp["bq"], lp["bk"], lp["bv"])
        attn = pallas_flash_attention(
            q2d.reshape(b, s_pad, d), k2d.reshape(b, s_pad, d),
            v2d.reshape(b, s_pad, d), cos_t, sin_t, bias,
            heads=heads, scale=scale)                              # (b, s_pad, d)
        x = pallas_linear_residual(attn.reshape(M, d), lp["wo"], lp["bo"],
                                   x2d).reshape(b, s_pad, d)

        # --- SwiGLU FFN block: fused LN2 + gate/up + SiLU, fused down-proj +
        #     residual add ---
        x2d = x.reshape(M, d)
        act = pallas_ln_swiglu(x2d, lp["ln2_g"], lp["ln2_b"],
                               lp["w1"], lp["b1"], lp["w3"], lp["b3"])  # (M, ffn)
        x = pallas_linear_residual(act, lp["w2"], lp["b2"],
                                   x2d).reshape(b, s_pad, d)

    x = pallas_layernorm(x.reshape(M, d), params["lnf_g"], params["lnf_b"])
    x = x.reshape(b, s_pad, d)
    # embeddings.last_hidden_state[:, 1:seq_len+1] -> drop CLS / EOS / padding
    return x[:, 1:n + 1]


# ----------------------------------------------------------------------------
if __name__ == "__main__":
    key = jax.random.PRNGKey(0)
    k_ids, k_params = jax.random.split(key)

    B, N = 2, 8                                       # batch=2, seq=8 residues
    cfg = dict(vocab=16, d=32, heads=4, ffn=64, layers=2)   # real model: d=1280

    # nucleotide residue ids in [21, 30], a couple of -1 (mask) entries
    na_ids = jax.random.randint(k_ids, (B, N), 21, 31, dtype=jnp.int32)
    na_ids = na_ids.at[0, 3].set(-1).at[1, 5].set(-1)

    params = init_params(k_params, **cfg)

    out = rinalmo_forward(na_ids, params, cfg)
    out = jax.block_until_ready(out)

    assert out.shape == (B, N, cfg["d"]), out.shape
    assert out.dtype == jnp.float32
    assert bool(jnp.all(jnp.isfinite(out)))
    print("KERNEL_OK")
</pallas_src>

<mosaic_0001>
module attributes {stable_mosaic.version = 11 : i64} {
  func.func @_ln_qkv_kernel(%arg0: i32, %arg1: i32, %arg2: memref<256x32xf32, #tpu.memory_space<vmem>>, %arg3: memref<1x32xf32, #tpu.memory_space<vmem>>, %arg4: memref<1x32xf32, #tpu.memory_space<vmem>>, %arg5: memref<32x32xbf16, #tpu.memory_space<vmem>>, %arg6: memref<32x32xbf16, #tpu.memory_space<vmem>>, %arg7: memref<32x32xbf16, #tpu.memory_space<vmem>>, %arg8: memref<1x32xf32, #tpu.memory_space<vmem>>, %arg9: memref<1x32xf32, #tpu.memory_space<vmem>>, %arg10: memref<1x32xf32, #tpu.memory_space<vmem>>, %arg11: memref<256x32xbf16, #tpu.memory_space<vmem>>, %arg12: memref<256x32xbf16, #tpu.memory_space<vmem>>, %arg13: memref<256x32xbf16, #tpu.memory_space<vmem>>, %arg14: memref<256x32xbf16, #tpu.memory_space<vmem>>) attributes {dimension_semantics = [#tpu.dimension_semantics<parallel>, #tpu.dimension_semantics<arbitrary>], iteration_bounds = array<i64: 1, 1>, scalar_prefetch = 0 : i64, scratch_operands = 1 : i64, tpu.core_type = #tpu.core_type<tc>, window_params = [{transform_indices = @transform_0, window_bounds = array<i64: 256, 32>}, {pipeline_mode = #tpu.pipeline_mode<synchronous>, transform_indices = @transform_1, window_bounds = array<i64: 1, 32>}, {pipeline_mode = #tpu.pipeline_mode<synchronous>, transform_indices = @transform_2, window_bounds = array<i64: 1, 32>}, {transform_indices = @transform_3, window_bounds = array<i64: 32, 32>}, {transform_indices = @transform_4, window_bounds = array<i64: 32, 32>}, {transform_indices = @transform_5, window_bounds = array<i64: 32, 32>}, {transform_indices = @transform_6, window_bounds = array<i64: 1, 32>}, {transform_indices = @transform_7, window_bounds = array<i64: 1, 32>}, {transform_indices = @transform_8, window_bounds = array<i64: 1, 32>}, {transform_indices = @transform_9, window_bounds = array<i64: 256, 32>}, {transform_indices = @transform_10, window_bounds = array<i64: 256, 32>}, {transform_indices = @transform_11, window_bounds = array<i64: 256, 32>}]} {
    %c0_i32 = arith.constant 0 : i32
    %0 = arith.cmpi eq, %arg1, %c0_i32 : i32
    %1 = arith.extui %0 : i1 to i32
    %c0_i32_0 = arith.constant 0 : i32
    %2 = arith.cmpi ne, %1, %c0_i32_0 : i32
    scf.if %2 {
      %c0_22 = arith.constant 0 : index
      %c0_23 = arith.constant 0 : index
      %25 = vector.load %arg2[%c0_22, %c0_23] : memref<256x32xf32, #tpu.memory_space<vmem>>, vector<256x32xf32>
      %cst_24 = arith.constant dense<0.000000e+00> : vector<256xf32>
      %26 = vector.multi_reduction <add>, %25, %cst_24 [1] : vector<256x32xf32> to vector<256xf32>
      %27 = vector.shape_cast %26 : vector<256xf32> to vector<256x1xf32>
      %cst_25 = arith.constant 3.200000e+01 : f32
      %28 = vector.broadcast %cst_25 : f32 to vector<256x1xf32>
      %29 = arith.divf %27, %28 : vector<256x1xf32>
      %30 = vector.broadcast %29 : vector<256x1xf32> to vector<256x32xf32>
      %31 = arith.subf %25, %30 : vector<256x32xf32>
      %32 = arith.mulf %31, %31 : vector<256x32xf32>
      %cst_26 = arith.constant dense<0.000000e+00> : vector<256xf32>
      %33 = vector.multi_reduction <add>, %32, %cst_26 [1] : vector<256x32xf32> to vector<256xf32>
      %34 = vector.shape_cast %33 : vector<256xf32> to vector<256x1xf32>
      %cst_27 = arith.constant 3.200000e+01 : f32
      %35 = vector.broadcast %cst_27 : f32 to vector<256x1xf32>
      %36 = arith.divf %34, %35 : vector<256x1xf32>
      %37 = vector.broadcast %29 : vector<256x1xf32> to vector<256x32xf32>
      %38 = arith.subf %25, %37 : vector<256x32xf32>
      %cst_28 = arith.constant 9.99999974E-6 : f32
      %39 = vector.broadcast %cst_28 : f32 to vector<256x1xf32>
      %40 = arith.addf %36, %39 : vector<256x1xf32>
      %41 = math.rsqrt %40 : vector<256x1xf32>
      %42 = vector.broadcast %41 : vector<256x1xf32> to vector<256x32xf32>
      %43 = arith.mulf %38, %42 : vector<256x32xf32>
      %c0_29 = arith.constant 0 : index
      %c0_30 = arith.constant 0 : index
      %44 = vector.load %arg3[%c0_29, %c0_30] : memref<1x32xf32, #tpu.memory_space<vmem>>, vector<1x32xf32>
      %45 = vector.broadcast %44 : vector<1x32xf32> to vector<256x32xf32>
      %46 = arith.mulf %43, %45 : vector<256x32xf32>
      %c0_31 = arith.constant 0 : index
      %c0_32 = arith.constant 0 : index
      %47 = vector.load %arg4[%c0_31, %c0_32] : memref<1x32xf32, #tpu.memory_space<vmem>>, vector<1x32xf32>
      %48 = vector.broadcast %47 : vector<1x32xf32> to vector<256x32xf32>
      %49 = arith.addf %46, %48 : vector<256x32xf32>
      %50 = arith.truncf %49 : vector<256x32xf32> to vector<256x32xbf16>
      %c0_33 = arith.constant 0 : index
      %c0_34 = arith.constant 0 : index
      %51 = vector.load %arg14[%c0_33, %c0_34] : memref<256x32xbf16, #tpu.memory_space<vmem>>, vector<256x32xbf16>
      tpu.vector_store %arg14[%c0_33, %c0_34], %50 {strides = array<i32>} : memref<256x32xbf16, #tpu.memory_space<vmem>>, vector<256x32xbf16>,
    } else {
    }
    %c0 = arith.constant 0 : index
    %c0_1 = arith.constant 0 : index
    %3 = vector.load %arg14[%c0, %c0_1] : memref<256x32xbf16, #tpu.memory_space<vmem>>, vector<256x32xbf16>
    %c0_2 = arith.constant 0 : index
    %c0_3 = arith.constant 0 : index
    %4 = vector.load %arg5[%c0_2, %c0_3] : memref<32x32xbf16, #tpu.memory_space<vmem>>, vector<32x32xbf16>
    %cst = arith.constant dense<0.000000e+00> : vector<256x32xf32>
    %5 = tpu.matmul %3, %4, %cst {dimension_numbers = #tpu.dot_dimension_numbers<[1], [0], [0], [1], [0, 0, 1, 1], [], []>} : vector<256x32xbf16>, vector<32x32xbf16>, vector<256x32xf32> -> vector<256x32xf32>
    %c0_4 = arith.constant 0 : index
    %c0_5 = arith.constant 0 : index
    %6 = vector.load %arg8[%c0_4, %c0_5] : memref<1x32xf32, #tpu.memory_space<vmem>>, vector<1x32xf32>
    %7 = vector.broadcast %6 : vector<1x32xf32> to vector<256x32xf32>
    %8 = arith.addf %5, %7 : vector<256x32xf32>
    %9 = arith.truncf %8 : vector<256x32xf32> to vector<256x32xbf16>
    %c0_6 = arith.constant 0 : index
    %c0_7 = arith.constant 0 : index
    %10 = vector.load %arg11[%c0_6, %c0_7] : memref<256x32xbf16, #tpu.memory_space<vmem>>, vector<256x32xbf16>
    tpu.vector_store %arg11[%c0_6, %c0_7], %9 {strides = array<i32>} : memref<256x32xbf16, #tpu.memory_space<vmem>>, vector<256x32xbf16>,
    %c0_8 = arith.constant 0 : index
    %c0_9 = arith.constant 0 : index
    %11 = vector.load %arg6[%c0_8, %c0_9] : memref<32x32xbf16, #tpu.memory_space<vmem>>, vector<32x32xbf16>
    %cst_10 = arith.constant dense<0.000000e+00> : vector<256x32xf32>
    %12 = tpu.matmul %3, %11, %cst_10 {dimension_numbers = #tpu.dot_dimension_numbers<[1], [0], [0], [1], [0, 0, 1, 1], [], []>} : vector<256x32xbf16>, vector<32x32xbf16>, vector<256x32xf32> -> vector<256x32xf32>
    %c0_11 = arith.constant 0 : index
    %c0_12 = arith.constant 0 : index
    %13 = vector.load %arg9[%c0_11, %c0_12] : memref<1x32xf32, #tpu.memory_space<vmem>>, vector<1x32xf32>
    %14 = vector.broadcast %13 : vector<1x32xf32> to vector<256x32xf32>
    %15 = arith.addf %12, %14 : vector<256x32xf32>
    %16 = arith.truncf %15 : vector<256x32xf32> to vector<256x32xbf16>
    %c0_13 = arith.constant 0 : index
    %c0_14 = arith.constant 0 : index
    %17 = vector.load %arg12[%c0_13, %c0_14] : memref<256x32xbf16, #tpu.memory_space<vmem>>, vector<256x32xbf16>
    tpu.vector_store %arg12[%c0_13, %c0_14], %16 {strides = array<i32>} : memref<256x32xbf16, #tpu.memory_space<vmem>>, vector<256x32xbf16>,
    %c0_15 = arith.constant 0 : index
    %c0_16 = arith.constant 0 : index
    %18 = vector.load %arg7[%c0_15, %c0_16] : memref<32x32xbf16, #tpu.memory_space<vmem>>, vector<32x32xbf16>
    %cst_17 = arith.constant dense<0.000000e+00> : vector<256x32xf32>
    %19 = tpu.matmul %3, %18, %cst_17 {dimension_numbers = #tpu.dot_dimension_numbers<[1], [0], [0], [1], [0, 0, 1, 1], [], []>} : vector<256x32xbf16>, vector<32x32xbf16>, vector<256x32xf32> -> vector<256x32xf32>
    %c0_18 = arith.constant 0 : index
    %c0_19 = arith.constant 0 : index
    %20 = vector.load %arg10[%c0_18, %c0_19] : memref<1x32xf32, #tpu.memory_space<vmem>>, vector<1x32xf32>
    %21 = vector.broadcast %20 : vector<1x32xf32> to vector<256x32xf32>
    %22 = arith.addf %19, %21 : vector<256x32xf32>
    %23 = arith.truncf %22 : vector<256x32xf32> to vector<256x32xbf16>
    %c0_20 = arith.constant 0 : index
    %c0_21 = arith.constant 0 : index
    %24 = vector.load %arg13[%c0_20, %c0_21] : memref<256x32xbf16, #tpu.memory_space<vmem>>, vector<256x32xbf16>
    tpu.vector_store %arg13[%c0_20, %c0_21], %23 {strides = array<i32>} : memref<256x32xbf16, #tpu.memory_space<vmem>>, vector<256x32xbf16>,
    return
  }
  func.func @transform_0(%arg0: i32, %arg1: i32) -> (i32, i32) {
    %c0_i32 = arith.constant 0 : i32
    %c0_i32_0 = arith.constant 0 : i32
    return %arg0, %c0_i32 : i32, i32
  }
  func.func @transform_1(%arg0: i32, %arg1: i32) -> (i32, i32) {
    %c0_i32 = arith.constant 0 : i32
    %c0_i32_0 = arith.constant 0 : i32
    %c0_i32_1 = arith.constant 0 : i32
    return %c0_i32, %c0_i32_0 : i32, i32
  }
  func.func @transform_2(%arg0: i32, %arg1: i32) -> (i32, i32) {
    %c0_i32 = arith.constant 0 : i32
    %c0_i32_0 = arith.constant 0 : i32
    %c0_i32_1 = arith.constant 0 : i32
    return %c0_i32, %c0_i32_0 : i32, i32
  }
  func.func @transform_3(%arg0: i32, %arg1: i32) -> (i32, i32) {
    %c0_i32 = arith.constant 0 : i32
    %c0_i32_0 = arith.constant 0 : i32
    return %c0_i32, %arg1 : i32, i32
  }
  func.func @transform_4(%arg0: i32, %arg1: i32) -> (i32, i32) {
    %c0_i32 = arith.constant 0 : i32
    %c0_i32_0 = arith.constant 0 : i32
    return %c0_i32, %arg1 : i32, i32
  }
  func.func @transform_5(%arg0: i32, %arg1: i32) -> (i32, i32) {
    %c0_i32 = arith.constant 0 : i32
    %c0_i32_0 = arith.constant 0 : i32
    return %c0_i32, %arg1 : i32, i32
  }
  func.func @transform_6(%arg0: i32, %arg1: i32) -> (i32, i32) {
    %c0_i32 = arith.constant 0 : i32
    %c0_i32_0 = arith.constant 0 : i32
    return %c0_i32, %arg1 : i32, i32
  }
  func.func @transform_7(%arg0: i32, %arg1: i32) -> (i32, i32) {
    %c0_i32 = arith.constant 0 : i32
    %c0_i32_0 = arith.constant 0 : i32
    return %c0_i32, %arg1 : i32, i32
  }
  func.func @transform_8(%arg0: i32, %arg1: i32) -> (i32, i32) {
    %c0_i32 = arith.constant 0 : i32
    %c0_i32_0 = arith.constant 0 : i32
    return %c0_i32, %arg1 : i32, i32
  }
  func.func @transform_9(%arg0: i32, %arg1: i32) -> (i32, i32) {
    %c0_i32 = arith.constant 0 : i32
    return %arg0, %arg1 : i32, i32
  }
  func.func @transform_10(%arg0: i32, %arg1: i32) -> (i32, i32) {
    %c0_i32 = arith.constant 0 : i32
    return %arg0, %arg1 : i32, i32
  }
  func.func @transform_11(%arg0: i32, %arg1: i32) -> (i32, i32) {
    %c0_i32 = arith.constant 0 : i32
    return %arg0, %arg1 : i32, i32
  }
}

</mosaic_0001>

<llo_original>
// kernel: tpu_custom_call.1
$region0: #{tpu_custom_call.1}
  #allocation0 [shape = 'u32[]', space=smem, size = 0x4, offset = 0x4, fixed_abs, tag = 'smem constant byte address 0x4 - core index']
  #allocation1 [shape = 'u32[144,128]{1,0:T(1,128)}', space=vmem, size = 0x12000, scoped, tag = 'internal scratch']
  #allocation2 [shape = 'bf16[256,32]{1,0:T(16,128)(2,1)}', space=vmem, size = 0x10000, scoped, tag = 'scratch operand']
  %s0 = inlined_call_operand.vmem [shape: f32[256,32], index: 0, kind: input, shape index: {}]
  %s1 = inlined_call_operand.vmem [shape: f32[1,32], index: 1, kind: input, shape index: {}]
  %s2 = inlined_call_operand.vmem [shape: f32[1,32], index: 2, kind: input, shape index: {}]
  %s3 = inlined_call_operand.vmem [shape: bf16[32,32], index: 3, kind: input, shape index: {}]
  %s4 = inlined_call_operand.vmem [shape: bf16[32,32], index: 4, kind: input, shape index: {}]
  %s5 = inlined_call_operand.vmem [shape: bf16[32,32], index: 5, kind: input, shape index: {}]
  %s6 = inlined_call_operand.vmem [shape: f32[1,32], index: 6, kind: input, shape index: {}]
  %s7 = inlined_call_operand.vmem [shape: f32[1,32], index: 7, kind: input, shape index: {}]
  %s8 = inlined_call_operand.vmem [shape: f32[1,32], index: 8, kind: input, shape index: {}]
  %s9 = inlined_call_operand.vmem [shape: bf16[256,32], index: 9, kind: output, shape index: {0}]
  %s10 = inlined_call_operand.vmem [shape: bf16[256,32], index: 10, kind: output, shape index: {1}]
  %s11 = inlined_call_operand.vmem [shape: bf16[256,32], index: 11, kind: output, shape index: {2}]
  %12 = xla_tuple %s9, %s10, %s11
  %s13 = sld [smem:[#allocation0]]
  $region66: #{tpu_custom_call.1} parent=0
    _
  %s15 = ssub.s32 1, %s13
  %s16 = scalar_select 0, %s15, %s13
  // Predicated region
  $region2: #{tpu_custom_call.1} parent=0 // pred_check
    _
  $region3: #{tpu_custom_call.1} parent=0 // pred_check_branch
    %18 = sbr.rel (0) target = $region5
  $region4: #{tpu_custom_call.1} parent=0 // pred_region
    _
  $region5: #{tpu_custom_call.1} parent=0 // pred_fallthru
    _
  // Predicated region
  $region6: #{tpu_custom_call.1} parent=0 // pred_check
    _
  $region7: #{tpu_custom_call.1} parent=0 // pred_check_branch
    %20 = sbr.rel (0) target = $region9
  $region8: #{tpu_custom_call.1} parent=0 // pred_region
    _
  $region9: #{tpu_custom_call.1} parent=0 // pred_fallthru
    _
  // Predicated region
  $region10: #{tpu_custom_call.1} parent=0 // pred_check
    _
  $region11: #{tpu_custom_call.1} parent=0 // pred_check_branch
    %22 = sbr.rel (0) target = $region13
  $region12: #{tpu_custom_call.1} parent=0 // pred_region
    _
  $region13: #{tpu_custom_call.1} parent=0 // pred_fallthru
    _
  // Predicated region
  $region14: #{tpu_custom_call.1} parent=0 // pred_check
    _
  $region15: #{tpu_custom_call.1} parent=0 // pred_check_branch
    %24 = sbr.rel (0) target = $region17
  $region16: #{tpu_custom_call.1} parent=0 // pred_region
    _
  $region17: #{tpu_custom_call.1} parent=0 // pred_fallthru
    _
  // Predicated region
  $region18: #{tpu_custom_call.1} parent=0 // pred_check
    _
  $region19: #{tpu_custom_call.1} parent=0 // pred_check_branch
    %26 = sbr.rel (0) target = $region21
  $region20: #{tpu_custom_call.1} parent=0 // pred_region
    _
  $region21: #{tpu_custom_call.1} parent=0 // pred_fallthru
    _
  // Predicated region
  $region22: #{tpu_custom_call.1} parent=0 // pred_check
    _
  $region23: #{tpu_custom_call.1} parent=0 // pred_check_branch
    %28 = sbr.rel (0) target = $region25
  $region24: #{tpu_custom_call.1} parent=0 // pred_region
    _
  $region25: #{tpu_custom_call.1} parent=0 // pred_fallthru
    _
  // Predicated region
  $region26: #{tpu_custom_call.1} parent=0 // pred_check
    _
  $region27: #{tpu_custom_call.1} parent=0 // pred_check_branch
    %30 = sbr.rel (0) target = $region29
  $region28: #{tpu_custom_call.1} parent=0 // pred_region
    _
  $region29: #{tpu_custom_call.1} parent=0 // pred_fallthru
    _
  // Predicated region
  $region30: #{tpu_custom_call.1} parent=0 // pred_check
    _
  $region31: #{tpu_custom_call.1} parent=0 // pred_check_branch
    %32 = sbr.rel (0) target = $region33
  $region32: #{tpu_custom_call.1} parent=0 // pred_region
    _
  $region33: #{tpu_custom_call.1} parent=0 // pred_fallthru
    _
  // Predicated region
  $region34: #{tpu_custom_call.1} parent=0 // pred_check
    _
  $region35: #{tpu_custom_call.1} parent=0 // pred_check_branch
    %34 = sbr.rel (0) target = $region37
  $region36: #{tpu_custom_call.1} parent=0 // pred_region
    _
  $region37: #{tpu_custom_call.1} parent=0 // pred_fallthru
    _
  %p36 = scmp.eq.s32.totalorder 0, 0
  // Predicated region
  $region38: #{tpu_custom_call.1} parent=0 // pred_check
    %p37 = pneg %p36
  $region39: #{tpu_custom_call.1} parent=0 // pred_check_branch
    %39 = sbr.rel (%p37) target = $region41
  $region40: #{tpu_custom_call.1} parent=0 // pred_region
    %v40 = vld [vmem:[%s0] sm:$0xff]
    %v41 = vld [vmem:[%s0 + $0x8] sm:$0xff]
    %v42 = vld [vmem:[%s0 + $0x10] sm:$0xff]
    %v43 = vld [vmem:[%s0 + $0x18] sm:$0xff]
    %v44 = vld [vmem:[%s0 + $0x20] sm:$0xff]
    %v45 = vld [vmem:[%s0 + $0x28] sm:$0xff]
    %v46 = vld [vmem:[%s0 + $0x30] sm:$0xff]
    %v47 = vld [vmem:[%s0 + $0x38] sm:$0xff]
    %v48 = vld [vmem:[%s0 + $0x40] sm:$0xff]
    %v49 = vld [vmem:[%s0 + $0x48] sm:$0xff]
    %v50 = vld [vmem:[%s0 + $0x50] sm:$0xff]
    %v51 = vld [vmem:[%s0 + $0x58] sm:$0xff]
    %v52 = vld [vmem:[%s0 + $0x60] sm:$0xff]
    %v53 = vld [vmem:[%s0 + $0x68] sm:$0xff]
    %v54 = vld [vmem:[%s0 + $0x70] sm:$0xff]
    %v55 = vld [vmem:[%s0 + $0x78] sm:$0xff]
    %v56 = vld [vmem:[%s0 + $0x80] sm:$0xff]
    %v57 = vld [vmem:[%s0 + $0x88] sm:$0xff]
    %v58 = vld [vmem:[%s0 + $0x90] sm:$0xff]
    %v59 = vld [vmem:[%s0 + $0x98] sm:$0xff]
    %v60 = vld [vmem:[%s0 + $0xa0] sm:$0xff]
    %v61 = vld [vmem:[%s0 + $0xa8] sm:$0xff]
    %v62 = vld [vmem:[%s0 + $0xb0] sm:$0xff]
    %v63 = vld [vmem:[%s0 + $0xb8] sm:$0xff]
    %v64 = vld [vmem:[%s0 + $0xc0] sm:$0xff]
    %v65 = vld [vmem:[%s0 + $0xc8] sm:$0xff]
    %v66 = vld [vmem:[%s0 + $0xd0] sm:$0xff]
    %v67 = vld [vmem:[%s0 + $0xd8] sm:$0xff]
    %v68 = vld [vmem:[%s0 + $0xe0] sm:$0xff]
    %v69 = vld [vmem:[%s0 + $0xe8] sm:$0xff]
    %v70 = vld [vmem:[%s0 + $0xf0] sm:$0xff]
    %v71 = vld [vmem:[%s0 + $0xf8] sm:$0xff]
    %vm72 = vcmask 261120
    %v73 = vsel %vm72, %v40, 0.0
    %74 = vadd.xlane.f32.xlu0 %v73
    %v75 = vpop.xlane.xlu0 %74
    %v76 = vsel %vm72, %v41, 0.0
    %77 = vadd.xlane.f32.xlu0 %v76
    %v78 = vpop.xlane.xlu0 %77
    %v79 = vsel %vm72, %v42, 0.0
    %80 = vadd.xlane.f32.xlu0 %v79
    %v81 = vpop.xlane.xlu0 %80
    %v82 = vsel %vm72, %v43, 0.0
    %83 = vadd.xlane.f32.xlu0 %v82
    %v84 = vpop.xlane.xlu0 %83
    %v85 = vsel %vm72, %v44, 0.0
    %86 = vadd.xlane.f32.xlu0 %v85
    %v87 = vpop.xlane.xlu0 %86
    %v88 = vsel %vm72, %v45, 0.0
    %89 = vadd.xlane.f32.xlu0 %v88
    %v90 = vpop.xlane.xlu0 %89
    %v91 = vsel %vm72, %v46, 0.0
    %92 = vadd.xlane.f32.xlu0 %v91
    %v93 = vpop.xlane.xlu0 %92
    %v94 = vsel %vm72, %v47, 0.0
    %95 = vadd.xlane.f32.xlu0 %v94
    %v96 = vpop.xlane.xlu0 %95
    %v97 = vsel %vm72, %v48, 0.0
    %98 = vadd.xlane.f32.xlu0 %v97
    %v99 = vpop.xlane.xlu0 %98
    %v100 = vsel %vm72, %v49, 0.0
    %101 = vadd.xlane.f32.xlu0 %v100
    %v102 = vpop.xlane.xlu0 %101
    %v103 = vsel %vm72, %v50, 0.0
    %104 = vadd.xlane.f32.xlu0 %v103
    %v105 = vpop.xlane.xlu0 %104
    %v106 = vsel %vm72, %v51, 0.0
    %107 = vadd.xlane.f32.xlu0 %v106
    %v108 = vpop.xlane.xlu0 %107
    %v109 = vsel %vm72, %v52, 0.0
    %110 = vadd.xlane.f32.xlu0 %v109
    %v111 = vpop.xlane.xlu0 %110
    %v112 = vsel %vm72, %v53, 0.0
    %113 = vadd.xlane.f32.xlu0 %v112
    %v114 = vpop.xlane.xlu0 %113
    %v115 = vsel %vm72, %v54, 0.0
    %116 = vadd.xlane.f32.xlu0 %v115
    %v117 = vpop.xlane.xlu0 %116
    %v118 = vsel %vm72, %v55, 0.0
    %119 = vadd.xlane.f32.xlu0 %v118
    %v120 = vpop.xlane.xlu0 %119
    %v121 = vsel %vm72, %v56, 0.0
    %122 = vadd.xlane.f32.xlu0 %v121
    %v123 = vpop.xlane.xlu0 %122
    %v124 = vsel %vm72, %v57, 0.0
    %125 = vadd.xlane.f32.xlu0 %v124
    %v126 = vpop.xlane.xlu0 %125
    %v127 = vsel %vm72, %v58, 0.0
    %128 = vadd.xlane.f32.xlu0 %v127
    %v129 = vpop.xlane.xlu0 %128
    %v130 = vsel %vm72, %v59, 0.0
    %131 = vadd.xlane.f32.xlu0 %v130
    %v132 = vpop.xlane.xlu0 %131
    %v133 = vsel %vm72, %v60, 0.0
    %134 = vadd.xlane.f32.xlu0 %v133
    %v135 = vpop.xlane.xlu0 %134
    %v136 = vsel %vm72, %v61, 0.0
    %137 = vadd.xlane.f32.xlu0 %v136
    %v138 = vpop.xlane.xlu0 %137
    %v139 = vsel %vm72, %v62, 0.0
    %140 = vadd.xlane.f32.xlu0 %v139
    %v141 = vpop.xlane.xlu0 %140
    %v142 = vsel %vm72, %v63, 0.0
    %143 = vadd.xlane.f32.xlu0 %v142
    %v144 = vpop.xlane.xlu0 %143
    %v145 = vsel %vm72, %v64, 0.0
    %146 = vadd.xlane.f32.xlu0 %v145
    %v147 = vpop.xlane.xlu0 %146
    %v148 = vsel %vm72, %v65, 0.0
    %149 = vadd.xlane.f32.xlu0 %v148
    %v150 = vpop.xlane.xlu0 %149
    %v151 = vsel %vm72, %v66, 0.0
    %152 = vadd.xlane.f32.xlu0 %v151
    %v153 = vpop.xlane.xlu0 %152
    %v154 = vsel %vm72, %v67, 0.0
    %155 = vadd.xlane.f32.xlu0 %v154
    %v156 = vpop.xlane.xlu0 %155
    %v157 = vsel %vm72, %v68, 0.0
    %158 = vadd.xlane.f32.xlu0 %v157
    %v159 = vpop.xlane.xlu0 %158
    %v160 = vsel %vm72, %v69, 0.0
    %161 = vadd.xlane.f32.xlu0 %v160
    %v162 = vpop.xlane.xlu0 %161
    %v163 = vsel %vm72, %v70, 0.0
    %164 = vadd.xlane.f32.xlu0 %v163
    %v165 = vpop.xlane.xlu0 %164
    %v166 = vsel %vm72, %v71, 0.0
    %167 = vadd.xlane.f32.xlu0 %v166
    %v168 = vpop.xlane.xlu0 %167
    %v169 = vrcp.pop 32.0
    %v170 = vmul.f32 %v75, %v169
    %v171 = vmul.f32 %v78, %v169
    %v172 = vmul.f32 %v81, %v169
    %v173 = vmul.f32 %v84, %v169
    %v174 = vmul.f32 %v87, %v169
    %v175 = vmul.f32 %v90, %v169
    %v176 = vmul.f32 %v93, %v169
    %v177 = vmul.f32 %v96, %v169
    %v178 = vmul.f32 %v99, %v169
    %v179 = vmul.f32 %v102, %v169
    %v180 = vmul.f32 %v105, %v169
    %v181 = vmul.f32 %v108, %v169
    %v182 = vmul.f32 %v111, %v169
    %v183 = vmul.f32 %v114, %v169
    %v184 = vmul.f32 %v117, %v169
    %v185 = vmul.f32 %v120, %v169
    %v186 = vmul.f32 %v123, %v169
    %v187 = vmul.f32 %v126, %v169
    %v188 = vmul.f32 %v129, %v169
    %v189 = vmul.f32 %v132, %v169
    %v190 = vmul.f32 %v135, %v169
    %v191 = vmul.f32 %v138, %v169
    %v192 = vmul.f32 %v141, %v169
    %v193 = vmul.f32 %v144, %v169
    %v194 = vmul.f32 %v147, %v169
    %v195 = vmul.f32 %v150, %v169
    %v196 = vmul.f32 %v153, %v169
    %v197 = vmul.f32 %v156, %v169
    %v198 = vmul.f32 %v159, %v169
    %v199 = vmul.f32 %v162, %v169
    %v200 = vmul.f32 %v165, %v169
    %v201 = vmul.f32 %v168, %v169
    %v202 = vsub.f32 %v40, %v170
    %v203 = vsub.f32 %v41, %v171
    %v204 = vsub.f32 %v42, %v172
    %v205 = vsub.f32 %v43, %v173
    %v206 = vsub.f32 %v44, %v174
    %v207 = vsub.f32 %v45, %v175
    %v208 = vsub.f32 %v46, %v176
    %v209 = vsub.f32 %v47, %v177
    %v210 = vsub.f32 %v48, %v178
    %v211 = vsub.f32 %v49, %v179
    %v212 = vsub.f32 %v50, %v180
    %v213 = vsub.f32 %v51, %v181
    %v214 = vsub.f32 %v52, %v182
    %v215 = vsub.f32 %v53, %v183
    %v216 = vsub.f32 %v54, %v184
    %v217 = vsub.f32 %v55, %v185
    %v218 = vsub.f32 %v56, %v186
    %v219 = vsub.f32 %v57, %v187
    %v220 = vsub.f32 %v58, %v188
    %v221 = vsub.f32 %v59, %v189
    %v222 = vsub.f32 %v60, %v190
    %v223 = vsub.f32 %v61, %v191
    %v224 = vsub.f32 %v62, %v192
    %v225 = vsub.f32 %v63, %v193
    %v226 = vsub.f32 %v64, %v194
    %v227 = vsub.f32 %v65, %v195
    %v228 = vsub.f32 %v66, %v196
    %v229 = vsub.f32 %v67, %v197
    %v230 = vsub.f32 %v68, %v198
    %v231 = vsub.f32 %v69, %v199
    %v232 = vsub.f32 %v70, %v200
    %v233 = vsub.f32 %v71, %v201
    %v234 = vmul.f32 %v202, %v202
    %v235 = vmul.f32 %v203, %v203
    %v236 = vmul.f32 %v204, %v204
    %v237 = vmul.f32 %v205, %v205
    %v238 = vmul.f32 %v206, %v206
    %v239 = vmul.f32 %v207, %v207
    %v240 = vmul.f32 %v208, %v208
    %v241 = vmul.f32 %v209, %v209
    %v242 = vmul.f32 %v210, %v210
    %v243 = vmul.f32 %v211, %v211
    %v244 = vmul.f32 %v212, %v212
    %v245 = vmul.f32 %v213, %v213
    %v246 = vmul.f32 %v214, %v214
    %v247 = vmul.f32 %v215, %v215
    %v248 = vmul.f32 %v216, %v216
    %v249 = vmul.f32 %v217, %v217
    %v250 = vmul.f32 %v218, %v218
    %v251 = vmul.f32 %v219, %v219
    %v252 = vmul.f32 %v220, %v220
    %v253 = vmul.f32 %v221, %v221
    %v254 = vmul.f32 %v222, %v222
    %v255 = vmul.f32 %v223, %v223
    %v256 = vmul.f32 %v224, %v224
    %v257 = vmul.f32 %v225, %v225
    %v258 = vmul.f32 %v226, %v226
    %v259 = vmul.f32 %v227, %v227
    %v260 = vmul.f32 %v228, %v228
    %v261 = vmul.f32 %v229, %v229
    %v262 = vmul.f32 %v230, %v230
    %v263 = vmul.f32 %v231, %v231
    %v264 = vmul.f32 %v232, %v232
    %v265 = vmul.f32 %v233, %v233
    %v266 = vsel %vm72, %v234, 0.0
    %267 = vadd.xlane.f32.xlu0 %v266
    %v268 = vpop.xlane.xlu0 %267
    %v269 = vsel %vm72, %v235, 0.0
    %270 = vadd.xlane.f32.xlu0 %v269
    %v271 = vpop.xlane.xlu0 %270
    %v272 = vsel %vm72, %v236, 0.0
    %273 = vadd.xlane.f32.xlu0 %v272
    %v274 = vpop.xlane.xlu0 %273
    %v275 = vsel %vm72, %v237, 0.0
    %276 = vadd.xlane.f32.xlu0 %v275
    %v277 = vpop.xlane.xlu0 %276
    %v278 = vsel %vm72, %v238, 0.0
    %279 = vadd.xlane.f32.xlu0 %v278
    %v280 = vpop.xlane.xlu0 %279
    %v281 = vsel %vm72, %v239, 0.0
    %282 = vadd.xlane.f32.xlu0 %v281
    %v283 = vpop.xlane.xlu0 %282
    %v284 = vsel %vm72, %v240, 0.0
    %285 = vadd.xlane.f32.xlu0 %v284
    %v286 = vpop.xlane.xlu0 %285
    %v287 = vsel %vm72, %v241, 0.0
    %288 = vadd.xlane.f32.xlu0 %v287
    %v289 = vpop.xlane.xlu0 %288
    %v290 = vsel %vm72, %v242, 0.0
    %291 = vadd.xlane.f32.xlu0 %v290
    %v292 = vpop.xlane.xlu0 %291
    %v293 = vsel %vm72, %v243, 0.0
    %294 = vadd.xlane.f32.xlu0 %v293
    %v295 = vpop.xlane.xlu0 %294
    %v296 = vsel %vm72, %v244, 0.0
    %297 = vadd.xlane.f32.xlu0 %v296
    %v298 = vpop.xlane.xlu0 %297
    %v299 = vsel %vm72, %v245, 0.0
    %300 = vadd.xlane.f32.xlu0 %v299
    %v301 = vpop.xlane.xlu0 %300
    %v302 = vsel %vm72, %v246, 0.0
    %303 = vadd.xlane.f32.xlu0 %v302
    %v304 = vpop.xlane.xlu0 %303
    %v305 = vsel %vm72, %v247, 0.0
    %306 = vadd.xlane.f32.xlu0 %v305
    %v307 = vpop.xlane.xlu0 %306
    %v308 = vsel %vm72, %v248, 0.0
    %309 = vadd.xlane.f32.xlu0 %v308
    %v310 = vpop.xlane.xlu0 %309
    %v311 = vsel %vm72, %v249, 0.0
    %312 = vadd.xlane.f32.xlu0 %v311
    %v313 = vpop.xlane.xlu0 %312
    %v314 = vsel %vm72, %v250, 0.0
    %315 = vadd.xlane.f32.xlu0 %v314
    %v316 = vpop.xlane.xlu0 %315
    %v317 = vsel %vm72, %v251, 0.0
    %318 = vadd.xlane.f32.xlu0 %v317
    %v319 = vpop.xlane.xlu0 %318
    %v320 = vsel %vm72, %v252, 0.0
    %321 = vadd.xlane.f32.xlu0 %v320
    %v322 = vpop.xlane.xlu0 %321
    %v323 = vsel %vm72, %v253, 0.0
    %324 = vadd.xlane.f32.xlu0 %v323
    %v325 = vpop.xlane.xlu0 %324
    %v326 = vsel %vm72, %v254, 0.0
    %327 = vadd.xlane.f32.xlu0 %v326
    %v328 = vpop.xlane.xlu0 %327
    %v329 = vsel %vm72, %v255, 0.0
    %330 = vadd.xlane.f32.xlu0 %v329
    %v331 = vpop.xlane.xlu0 %330
    %v332 = vsel %vm72, %v256, 0.0
    %333 = vadd.xlane.f32.xlu0 %v332
    %v334 = vpop.xlane.xlu0 %333
    %v335 = vsel %vm72, %v257, 0.0
    %336 = vadd.xlane.f32.xlu0 %v335
    %v337 = vpop.xlane.xlu0 %336
    %v338 = vsel %vm72, %v258, 0.0
    %339 = vadd.xlane.f32.xlu0 %v338
    %v340 = vpop.xlane.xlu0 %339
    %v341 = vsel %vm72, %v259, 0.0
    %342 = vadd.xlane.f32.xlu0 %v341
    %v343 = vpop.xlane.xlu0 %342
    %v344 = vsel %vm72, %v260, 0.0
    %345 = vadd.xlane.f32.xlu0 %v344
    %v346 = vpop.xlane.xlu0 %345
    %v347 = vsel %vm72, %v261, 0.0
    %348 = vadd.xlane.f32.xlu0 %v347
    %v349 = vpop.xlane.xlu0 %348
    %v350 = vsel %vm72, %v262, 0.0
    %351 = vadd.xlane.f32.xlu0 %v350
    %v352 = vpop.xlane.xlu0 %351
    %v353 = vsel %vm72, %v263, 0.0
    %354 = vadd.xlane.f32.xlu0 %v353
    %v355 = vpop.xlane.xlu0 %354
    %v356 = vsel %vm72, %v264, 0.0
    %357 = vadd.xlane.f32.xlu0 %v356
    %v358 = vpop.xlane.xlu0 %357
    %v359 = vsel %vm72, %v265, 0.0
    %360 = vadd.xlane.f32.xlu0 %v359
    %v361 = vpop.xlane.xlu0 %360
    %v362 = vmul.f32 %v268, %v169
    %v363 = vmul.f32 %v271, %v169
    %v364 = vmul.f32 %v274, %v169
    %v365 = vmul.f32 %v277, %v169
    %v366 = vmul.f32 %v280, %v169
    %v367 = vmul.f32 %v283, %v169
    %v368 = vmul.f32 %v286, %v169
    %v369 = vmul.f32 %v289, %v169
    %v370 = vmul.f32 %v292, %v169
    %v371 = vmul.f32 %v295, %v169
    %v372 = vmul.f32 %v298, %v169
    %v373 = vmul.f32 %v301, %v169
    %v374 = vmul.f32 %v304, %v169
    %v375 = vmul.f32 %v307, %v169
    %v376 = vmul.f32 %v310, %v169
    %v377 = vmul.f32 %v313, %v169
    %v378 = vmul.f32 %v316, %v169
    %v379 = vmul.f32 %v319, %v169
    %v380 = vmul.f32 %v322, %v169
    %v381 = vmul.f32 %v325, %v169
    %v382 = vmul.f32 %v328, %v169
    %v383 = vmul.f32 %v331, %v169
    %v384 = vmul.f32 %v334, %v169
    %v385 = vmul.f32 %v337, %v169
    %v386 = vmul.f32 %v340, %v169
    %v387 = vmul.f32 %v343, %v169
    %v388 = vmul.f32 %v346, %v169
    %v389 = vmul.f32 %v349, %v169
    %v390 = vmul.f32 %v352, %v169
    %v391 = vmul.f32 %v355, %v169
    %v392 = vmul.f32 %v358, %v169
    %v393 = vmul.f32 %v361, %v169
    %v394 = vadd.f32 %v362, 1e-05
    %v395 = vadd.f32 %v363, 1e-05
    %v396 = vadd.f32 %v364, 1e-05
    %v397 = vadd.f32 %v365, 1e-05
    %v398 = vadd.f32 %v366, 1e-05
    %v399 = vadd.f32 %v367, 1e-05
    %v400 = vadd.f32 %v368, 1e-05
    %v401 = vadd.f32 %v369, 1e-05
    %v402 = vadd.f32 %v370, 1e-05
    %v403 = vadd.f32 %v371, 1e-05
    %v404 = vadd.f32 %v372, 1e-05
    %v405 = vadd.f32 %v373, 1e-05
    %v406 = vadd.f32 %v374, 1e-05
    %v407 = vadd.f32 %v375, 1e-05
    %v408 = vadd.f32 %v376, 1e-05
    %v409 = vadd.f32 %v377, 1e-05
    %v410 = vadd.f32 %v378, 1e-05
    %v411 = vadd.f32 %v379, 1e-05
    %v412 = vadd.f32 %v380, 1e-05
    %v413 = vadd.f32 %v381, 1e-05
    %v414 = vadd.f32 %v382, 1e-05
    %v415 = vadd.f32 %v383, 1e-05
    %v416 = vadd.f32 %v384, 1e-05
    %v417 = vadd.f32 %v385, 1e-05
    %v418 = vadd.f32 %v386, 1e-05
    %v419 = vadd.f32 %v387, 1e-05
    %v420 = vadd.f32 %v388, 1e-05
    %v421 = vadd.f32 %v389, 1e-05
    %v422 = vadd.f32 %v390, 1e-05
    %v423 = vadd.f32 %v391, 1e-05
    %v424 = vadd.f32 %v392, 1e-05
    %v425 = vadd.f32 %v393, 1e-05
    %v426 = vrsqrt.pop %v394
    %v427 = vrsqrt.pop %v395
    %v428 = vrsqrt.pop %v396
    %v429 = vrsqrt.pop %v397
    %v430 = vrsqrt.pop %v398
    %v431 = vrsqrt.pop %v399
    %v432 = vrsqrt.pop %v400
    %v433 = vrsqrt.pop %v401
    %v434 = vrsqrt.pop %v402
    %v435 = vrsqrt.pop %v403
    %v436 = vrsqrt.pop %v404
    %v437 = vrsqrt.pop %v405
    %v438 = vrsqrt.pop %v406
    %v439 = vrsqrt.pop %v407
    %v440 = vrsqrt.pop %v408
    %v441 = vrsqrt.pop %v409
    %v442 = vrsqrt.pop %v410
    %v443 = vrsqrt.pop %v411
    %v444 = vrsqrt.pop %v412
    %v445 = vrsqrt.pop %v413
    %v446 = vrsqrt.pop %v414
    %v447 = vrsqrt.pop %v415
    %v448 = vrsqrt.pop %v416
    %v449 = vrsqrt.pop %v417
    %v450 = vrsqrt.pop %v418
    %v451 = vrsqrt.pop %v419
    %v452 = vrsqrt.pop %v420
    %v453 = vrsqrt.pop %v421
    %v454 = vrsqrt.pop %v422
    %v455 = vrsqrt.pop %v423
    %v456 = vrsqrt.pop %v424
    %v457 = vrsqrt.pop %v425
    %v458 = vmul.f32 %v202, %v426
    %v459 = vmul.f32 %v203, %v427
    %v460 = vmul.f32 %v204, %v428
    %v461 = vmul.f32 %v205, %v429
    %v462 = vmul.f32 %v206, %v430
    %v463 = vmul.f32 %v207, %v431
    %v464 = vmul.f32 %v208, %v432
    %v465 = vmul.f32 %v209, %v433
    %v466 = vmul.f32 %v210, %v434
    %v467 = vmul.f32 %v211, %v435
    %v468 = vmul.f32 %v212, %v436
    %v469 = vmul.f32 %v213, %v437
    %v470 = vmul.f32 %v214, %v438
    %v471 = vmul.f32 %v215, %v439
    %v472 = vmul.f32 %v216, %v440
    %v473 = vmul.f32 %v217, %v441
    %v474 = vmul.f32 %v218, %v442
    %v475 = vmul.f32 %v219, %v443
    %v476 = vmul.f32 %v220, %v444
    %v477 = vmul.f32 %v221, %v445
    %v478 = vmul.f32 %v222, %v446
    %v479 = vmul.f32 %v223, %v447
    %v480 = vmul.f32 %v224, %v448
    %v481 = vmul.f32 %v225, %v449
    %v482 = vmul.f32 %v226, %v450
    %v483 = vmul.f32 %v227, %v451
    %v484 = vmul.f32 %v228, %v452
    %v485 = vmul.f32 %v229, %v453
    %v486 = vmul.f32 %v230, %v454
    %v487 = vmul.f32 %v231, %v455
    %v488 = vmul.f32 %v232, %v456
    %v489 = vmul.f32 %v233, %v457
    %v490 = vld [vmem:[%s1] sm:$0x1]
    %v492 = vlaneseq
    %v493 = vshrl.u32 %v492, 7
    %v494 = vsub.s32 0, %v493
    %v495 = vrot.slane %v490, %v494
    %v497 = vmul.f32 %v458, %v495
    %v498 = vmul.f32 %v459, %v495
    %v499 = vmul.f32 %v460, %v495
    %v500 = vmul.f32 %v461, %v495
    %v501 = vmul.f32 %v462, %v495
    %v502 = vmul.f32 %v463, %v495
    %v503 = vmul.f32 %v464, %v495
    %v504 = vmul.f32 %v465, %v495
    %v505 = vmul.f32 %v466, %v495
    %v506 = vmul.f32 %v467, %v495
    %v507 = vmul.f32 %v468, %v495
    %v508 = vmul.f32 %v469, %v495
    %v509 = vmul.f32 %v470, %v495
    %v510 = vmul.f32 %v471, %v495
    %v511 = vmul.f32 %v472, %v495
    %v512 = vmul.f32 %v473, %v495
    %v513 = vmul.f32 %v474, %v495
    %v514 = vmul.f32 %v475, %v495
    %v515 = vmul.f32 %v476, %v495
    %v516 = vmul.f32 %v477, %v495
    %v517 = vmul.f32 %v478, %v495
    %v518 = vmul.f32 %v479, %v495
    %v519 = vmul.f32 %v480, %v495
    %v520 = vmul.f32 %v481, %v495
    %v521 = vmul.f32 %v482, %v495
    %v522 = vmul.f32 %v483, %v495
    %v523 = vmul.f32 %v484, %v495
    %v524 = vmul.f32 %v485, %v495
    %v525 = vmul.f32 %v486, %v495
    %v526 = vmul.f32 %v487, %v495
    %v527 = vmul.f32 %v488, %v495
    %v528 = vmul.f32 %v489, %v495
    %v529 = vld [vmem:[%s2] sm:$0x1]
    %v531 = vlaneseq
    %v532 = vshrl.u32 %v531, 7
    %v533 = vsub.s32 0, %v532
    %v534 = vrot.slane %v529, %v533
    %v536 = vadd.f32 %v497, %v534
    %v537 = vadd.f32 %v498, %v534
    %v538 = vadd.f32 %v499, %v534
    %v539 = vadd.f32 %v500, %v534
    %v540 = vadd.f32 %v501, %v534
    %v541 = vadd.f32 %v502, %v534
    %v542 = vadd.f32 %v503, %v534
    %v543 = vadd.f32 %v504, %v534
    %v544 = vadd.f32 %v505, %v534
    %v545 = vadd.f32 %v506, %v534
    %v546 = vadd.f32 %v507, %v534
    %v547 = vadd.f32 %v508, %v534
    %v548 = vadd.f32 %v509, %v534
    %v549 = vadd.f32 %v510, %v534
    %v550 = vadd.f32 %v511, %v534
    %v551 = vadd.f32 %v512, %v534
    %v552 = vadd.f32 %v513, %v534
    %v553 = vadd.f32 %v514, %v534
    %v554 = vadd.f32 %v515, %v534
    %v555 = vadd.f32 %v516, %v534
    %v556 = vadd.f32 %v517, %v534
    %v557 = vadd.f32 %v518, %v534
    %v558 = vadd.f32 %v519, %v534
    %v559 = vadd.f32 %v520, %v534
    %v560 = vadd.f32 %v521, %v534
    %v561 = vadd.f32 %v522, %v534
    %v562 = vadd.f32 %v523, %v534
    %v563 = vadd.f32 %v524, %v534
    %v564 = vadd.f32 %v525, %v534
    %v565 = vadd.f32 %v526, %v534
    %v566 = vadd.f32 %v527, %v534
    %v567 = vadd.f32 %v528, %v534
    %v568 = vpack.c.bf16 %v537, %v536
    %v569 = vpack.c.bf16 %v539, %v538
    %v570 = vpack.c.bf16 %v541, %v540
    %v571 = vpack.c.bf16 %v543, %v542
    %v572 = vpack.c.bf16 %v545, %v544
    %v573 = vpack.c.bf16 %v547, %v546
    %v574 = vpack.c.bf16 %v549, %v548
    %v575 = vpack.c.bf16 %v551, %v550
    %v576 = vpack.c.bf16 %v553, %v552
    %v577 = vpack.c.bf16 %v555, %v554
    %v578 = vpack.c.bf16 %v557, %v556
    %v579 = vpack.c.bf16 %v559, %v558
    %v580 = vpack.c.bf16 %v561, %v560
    %v581 = vpack.c.bf16 %v563, %v562
    %v582 = vpack.c.bf16 %v565, %v564
    %v583 = vpack.c.bf16 %v567, %v566
    %584 = vst.msk [vmem:[#allocation2] sm:$0xff] %vm72, %v568
    %585 = vst.msk [vmem:[#allocation2 + $0x8] sm:$0xff] %vm72, %v569
    %586 = vst.msk [vmem:[#allocation2 + $0x10] sm:$0xff] %vm72, %v570
    %587 = vst.msk [vmem:[#allocation2 + $0x18] sm:$0xff] %vm72, %v571
    %588 = vst.msk [vmem:[#allocation2 + $0x20] sm:$0xff] %vm72, %v572
    %589 = vst.msk [vmem:[#allocation2 + $0x28] sm:$0xff] %vm72, %v573
    %590 = vst.msk [vmem:[#allocation2 + $0x30] sm:$0xff] %vm72, %v574
    %591 = vst.msk [vmem:[#allocation2 + $0x38] sm:$0xff] %vm72, %v575
    %592 = vst.msk [vmem:[#allocation2 + $0x40] sm:$0xff] %vm72, %v576
    %593 = vst.msk [vmem:[#allocation2 + $0x48] sm:$0xff] %vm72, %v577
    %594 = vst.msk [vmem:[#allocation2 + $0x50] sm:$0xff] %vm72, %v578
    %595 = vst.msk [vmem:[#allocation2 + $0x58] sm:$0xff] %vm72, %v579
    %596 = vst.msk [vmem:[#allocation2 + $0x60] sm:$0xff] %vm72, %v580
    %597 = vst.msk [vmem:[#allocation2 + $0x68] sm:$0xff] %vm72, %v581
    %598 = vst.msk [vmem:[#allocation2 + $0x70] sm:$0xff] %vm72, %v582
    %599 = vst.msk [vmem:[#allocation2 + $0x78] sm:$0xff] %vm72, %v583
  $region41: #{tpu_custom_call.1} parent=0 // pred_fallthru
    _
  %v600 = vld [vmem:[#allocation2] sm:$0xff]
  %v601 = vld [vmem:[#allocation2 + $0x8] sm:$0xff]
  %v602 = vld [vmem:[#allocation2 + $0x10] sm:$0xff]
  %v603 = vld [vmem:[#allocation2 + $0x18] sm:$0xff]
  %v604 = vld [vmem:[#allocation2 + $0x20] sm:$0xff]
  %v605 = vld [vmem:[#allocation2 + $0x28] sm:$0xff]
  %v606 = vld [vmem:[#allocation2 + $0x30] sm:$0xff]
  %v607 = vld [vmem:[#allocation2 + $0x38] sm:$0xff]
  %v608 = vld [vmem:[#allocation2 + $0x40] sm:$0xff]
  %v609 = vld [vmem:[#allocation2 + $0x48] sm:$0xff]
  %v610 = vld [vmem:[#allocation2 + $0x50] sm:$0xff]
  %v611 = vld [vmem:[#allocation2 + $0x58] sm:$0xff]
  %v612 = vld [vmem:[#allocation2 + $0x60] sm:$0xff]
  %v613 = vld [vmem:[#allocation2 + $0x68] sm:$0xff]
  %v614 = vld [vmem:[#allocation2 + $0x70] sm:$0xff]
  %v615 = vld [vmem:[#allocation2 + $0x78] sm:$0xff]
  %v616 = vld [vmem:[%s3] sm:$0xf]
  %v617 = vld [vmem:[%s3 + $0x4] sm:$0xf]
  %v618 = vld [vmem:[%s3 + $0x8] sm:$0xf]
  %v619 = vld [vmem:[%s3 + $0xc] sm:$0xf]
  %v620 = vld [vmem:[%s6] sm:$0x1]
  %v622 = vlaneseq
  %v623 = vshrl.u32 %v622, 7
  %v624 = vsub.s32 0, %v623
  %v625 = vrot.slane %v620, %v624
  %v631 = vunpack.c.l.b16 %v616
  %v632 = vunpack.c.l.b16 %v617
  %v633 = vunpack.c.l.b16 %v618
  %v634 = vunpack.c.l.b16 %v619
  %v635 = vpack.c.b16 %v632, %v631
  %v636 = vpack.c.b16 %v634, %v633
  %vm639 = vcmask 261120
  %v641 = vsel %vm639, %v600, 0
  %v644 = vsel %vm639, %v601, 0
  %v647 = vsel %vm639, %v602, 0
  %v650 = vsel %vm639, %v603, 0
  %v653 = vsel %vm639, %v604, 0
  %v656 = vsel %vm639, %v605, 0
  %v659 = vsel %vm639, %v606, 0
  %v662 = vsel %vm639, %v607, 0
  %v665 = vsel %vm639, %v608, 0
  %v668 = vsel %vm639, %v609, 0
  %v671 = vsel %vm639, %v610, 0
  %v674 = vsel %vm639, %v611, 0
  %v677 = vsel %vm639, %v612, 0
  %v680 = vsel %vm639, %v613, 0
  %v683 = vsel %vm639, %v614, 0
  %v686 = vsel %vm639, %v615, 0
  %688 = vmatprep.subr.bf16.mxu0 0
  %689 = vmatpush1.bf16.msra.mxu0 %v635
  %690 = vmatprep.subr.bf16.mxu0 0
  %691 = vmatpush1.bf16.msra.mxu0 %v636
  %692 = vmatprep.subr.bf16.mxu0 0
  %693 = vmatpush1.bf16.msra.mxu0 0
  %694 = vmatprep.subr.bf16.mxu0 0
  %695 = vmatpush1.bf16.msra.mxu0 0
  %696 = vmatprep.subr.bf16.mxu0 0
  %697 = vmatpush1.bf16.msra.mxu0 0
  %698 = vmatprep.subr.bf16.mxu0 0
  %699 = vmatpush1.bf16.msra.mxu0 0
  %700 = vmatprep.subr.bf16.mxu0 0
  %701 = vmatpush1.bf16.msra.mxu0 0
  %702 = vmatprep.subr.bf16.mxu0 0
  %703 = vmatpush1.bf16.msra.mxu0 0
  %704 = vmatprep.subr.bf16.mxu0 0
  %705 = vmatpush1.bf16.msra.mxu0 0
  %706 = vmatprep.subr.bf16.mxu0 0
  %707 = vmatpush1.bf16.msra.mxu0 0
  %708 = vmatprep.subr.bf16.mxu0 0
  %709 = vmatpush1.bf16.msra.mxu0 0
  %710 = vmatprep.subr.bf16.mxu0 0
  %711 = vmatpush1.bf16.msra.mxu0 0
  %712 = vmatprep.subr.bf16.mxu0 0
  %713 = vmatpush1.bf16.msra.mxu0 0
  %714 = vmatprep.subr.bf16.mxu0 0
  %715 = vmatpush1.bf16.msra.mxu0 0
  %716 = vmatprep.subr.bf16.mxu0 0
  %717 = vmatpush1.bf16.msra.mxu0 0
  %718 = vmatprep.subr.bf16.mxu0 0
  %719 = vmatpush1.bf16.msra.mxu0 0
  %720 = vmatprep.mubr.bf16.mxu0 0
  %721 = vmatmul.mubr.bf16.gmra.mrb[0].mxu0 %v641
  %v722 = vpop.f32.mrb[0].mxu0
  %v723 = vadd.f32 %v625, %v722
  %v724 = vpop.f32.mrb[0].mxu0
  %v725 = vpop.f32.mrb[0].mxu0
  %v726 = vadd.f32 %v625, %v725
  %v727 = vpop.f32.mrb[0].mxu0
  %728 = vmatprep.mubr.bf16.mxu0 0
  %729 = vmatmul.mubr.bf16.gmra.mrb[0].mxu0 %v644
  %v730 = vpop.f32.mrb[0].mxu0
  %v731 = vadd.f32 %v625, %v730
  %v732 = vpop.f32.mrb[0].mxu0
  %v733 = vpop.f32.mrb[0].mxu0
  %v734 = vadd.f32 %v625, %v733
  %v735 = vpop.f32.mrb[0].mxu0
  %736 = vmatprep.mubr.bf16.mxu0 0
  %737 = vmatmul.mubr.bf16.gmra.mrb[0].mxu0 %v647
  %v738 = vpop.f32.mrb[0].mxu0
  %v739 = vadd.f32 %v625, %v738
  %v740 = vpop.f32.mrb[0].mxu0
  %v741 = vpop.f32.mrb[0].mxu0
  %v742 = vadd.f32 %v625, %v741
  %v743 = vpop.f32.mrb[0].mxu0
  %744 = vmatprep.mubr.bf16.mxu0 0
  %745 = vmatmul.mubr.bf16.gmra.mrb[0].mxu0 %v650
  %v746 = vpop.f32.mrb[0].mxu0
  %v747 = vadd.f32 %v625, %v746
  %v748 = vpop.f32.mrb[0].mxu0
  %v749 = vpop.f32.mrb[0].mxu0
  %v750 = vadd.f32 %v625, %v749
  %v751 = vpop.f32.mrb[0].mxu0
  %752 = vmatprep.mubr.bf16.mxu0 0
  %753 = vmatmul.mubr.bf16.gmra.mrb[0].mxu0 %v653
  %v754 = vpop.f32.mrb[0].mxu0
  %v755 = vadd.f32 %v625, %v754
  %v756 = vpop.f32.mrb[0].mxu0
  %v757 = vpop.f32.mrb[0].mxu0
  %v758 = vadd.f32 %v625, %v757
  %v759 = vpop.f32.mrb[0].mxu0
  %760 = vmatprep.mubr.bf16.mxu0 0
  %761 = vmatmul.mubr.bf16.gmra.mrb[0].mxu0 %v656
  %v762 = vpop.f32.mrb[0].mxu0
  %v763 = vadd.f32 %v625, %v762
  %v764 = vpop.f32.mrb[0].mxu0
  %v765 = vpop.f32.mrb[0].mxu0
  %v766 = vadd.f32 %v625, %v765
  %v767 = vpop.f32.mrb[0].mxu0
  %768 = vmatprep.mubr.bf16.mxu0 0
  %769 = vmatmul.mubr.bf16.gmra.mrb[0].mxu0 %v659
  %v770 = vpop.f32.mrb[0].mxu0
  %v771 = vadd.f32 %v625, %v770
  %v772 = vpop.f32.mrb[0].mxu0
  %v773 = vpop.f32.mrb[0].mxu0
  %v774 = vadd.f32 %v625, %v773
  %v775 = vpop.f32.mrb[0].mxu0
  %776 = vmatprep.mubr.bf16.mxu0 0
  %777 = vmatmul.mubr.bf16.gmra.mrb[0].mxu0 %v662
  %v778 = vpop.f32.mrb[0].mxu0
  %v779 = vadd.f32 %v625, %v778
  %v780 = vpop.f32.mrb[0].mxu0
  %v781 = vpop.f32.mrb[0].mxu0
  %v782 = vadd.f32 %v625, %v781
  %v783 = vpop.f32.mrb[0].mxu0
  %784 = vmatprep.mubr.bf16.mxu0 0
  %785 = vmatmul.mubr.bf16.gmra.mrb[0].mxu0 %v665
  %v786 = vpop.f32.mrb[0].mxu0
  %v787 = vadd.f32 %v625, %v786
  %v788 = vpop.f32.mrb[0].mxu0
  %v789 = vpop.f32.mrb[0].mxu0
  %v790 = vadd.f32 %v625, %v789
  %v791 = vpop.f32.mrb[0].mxu0
  %792 = vmatprep.mubr.bf16.mxu0 0
  %793 = vmatmul.mubr.bf16.gmra.mrb[0].mxu0 %v668
  %v794 = vpop.f32.mrb[0].mxu0
  %v795 = vadd.f32 %v625, %v794
  %v796 = vpop.f32.mrb[0].mxu0
  %v797 = vpop.f32.mrb[0].mxu0
  %v798 = vadd.f32 %v625, %v797
  %v799 = vpop.f32.mrb[0].mxu0
  %800 = vmatprep.mubr.bf16.mxu0 0
  %801 = vmatmul.mubr.bf16.gmra.mrb[0].mxu0 %v671
  %v802 = vpop.f32.mrb[0].mxu0
  %v803 = vadd.f32 %v625, %v802
  %v804 = vpop.f32.mrb[0].mxu0
  %v805 = vpop.f32.mrb[0].mxu0
  %v806 = vadd.f32 %v625, %v805
  %v807 = vpop.f32.mrb[0].mxu0
  %808 = vmatprep.mubr.bf16.mxu0 0
  %809 = vmatmul.mubr.bf16.gmra.mrb[0].mxu0 %v674
  %v810 = vpop.f32.mrb[0].mxu0
  %v811 = vadd.f32 %v625, %v810
  %v812 = vpop.f32.mrb[0].mxu0
  %v813 = vpop.f32.mrb[0].mxu0
  %v814 = vadd.f32 %v625, %v813
  %v815 = vpop.f32.mrb[0].mxu0
  %816 = vmatprep.mubr.bf16.mxu0 0
  %817 = vmatmul.mubr.bf16.gmra.mrb[0].mxu0 %v677
  %v818 = vpop.f32.mrb[0].mxu0
  %v819 = vadd.f32 %v625, %v818
  %v820 = vpop.f32.mrb[0].mxu0
  %v821 = vpop.f32.mrb[0].mxu0
  %v822 = vadd.f32 %v625, %v821
  %v823 = vpop.f32.mrb[0].mxu0
  %824 = vmatprep.mubr.bf16.mxu0 0
  %825 = vmatmul.mubr.bf16.gmra.mrb[0].mxu0 %v680
  %v826 = vpop.f32.mrb[0].mxu0
  %v827 = vadd.f32 %v625, %v826
  %v828 = vpop.f32.mrb[0].mxu0
  %v829 = vpop.f32.mrb[0].mxu0
  %v830 = vadd.f32 %v625, %v829
  %v831 = vpop.f32.mrb[0].mxu0
  %832 = vmatprep.mubr.bf16.mxu0 0
  %833 = vmatmul.mubr.bf16.gmra.mrb[0].mxu0 %v683
  %v834 = vpop.f32.mrb[0].mxu0
  %v835 = vadd.f32 %v625, %v834
  %v836 = vpop.f32.mrb[0].mxu0
  %v837 = vpop.f32.mrb[0].mxu0
  %v838 = vadd.f32 %v625, %v837
  %v839 = vpop.f32.mrb[0].mxu0
  %840 = vmatprep.mubr.bf16.mxu0 0
  %841 = vmatmul.mubr.bf16.gmra.mrb[0].mxu0 %v686
  %v842 = vpop.f32.mrb[0].mxu0
  %v843 = vadd.f32 %v625, %v842
  %v844 = vpop.f32.mrb[0].mxu0
  %v845 = vpop.f32.mrb[0].mxu0
  %v846 = vadd.f32 %v625, %v845
  %v847 = vpop.f32.mrb[0].mxu0
  %848 = vdwg.mxu0
  %v849 = vpack.c.bf16 %v726, %v723
  %v850 = vpack.c.bf16 %v734, %v731
  %v851 = vpack.c.bf16 %v742, %v739
  %v852 = vpack.c.bf16 %v750, %v747
  %v853 = vpack.c.bf16 %v758, %v755
  %v854 = vpack.c.bf16 %v766, %v763
  %v855 = vpack.c.bf16 %v774, %v771
  %v856 = vpack.c.bf16 %v782, %v779
  %v857 = vpack.c.bf16 %v790, %v787
  %v858 = vpack.c.bf16 %v798, %v795
  %v859 = vpack.c.bf16 %v806, %v803
  %v860 = vpack.c.bf16 %v814, %v811
  %v861 = vpack.c.bf16 %v822, %v819
  %v862 = vpack.c.bf16 %v830, %v827
  %v863 = vpack.c.bf16 %v838, %v835
  %v864 = vpack.c.bf16 %v846, %v843
  %v881 = vunpack.c.l.b16 %v849
  %v882 = vunpack.c.h.b16 %v849
  %v883 = vunpack.c.l.b16 %v850
  %v884 = vunpack.c.h.b16 %v850
  %v885 = vunpack.c.l.b16 %v851
  %v886 = vunpack.c.h.b16 %v851
  %v887 = vunpack.c.l.b16 %v852
  %v888 = vunpack.c.h.b16 %v852
  %v889 = vunpack.c.l.b16 %v853
  %v890 = vunpack.c.h.b16 %v853
  %v891 = vunpack.c.l.b16 %v854
  %v892 = vunpack.c.h.b16 %v854
  %v893 = vunpack.c.l.b16 %v855
  %v894 = vunpack.c.h.b16 %v855
  %v895 = vunpack.c.l.b16 %v856
  %v896 = vunpack.c.h.b16 %v856
  %v897 = vunpack.c.l.b16 %v857
  %v898 = vunpack.c.h.b16 %v857
  %v899 = vunpack.c.l.b16 %v858
  %v900 = vunpack.c.h.b16 %v858
  %v901 = vunpack.c.l.b16 %v859
  %v902 = vunpack.c.h.b16 %v859
  %v903 = vunpack.c.l.b16 %v860
  %v904 = vunpack.c.h.b16 %v860
  %v905 = vunpack.c.l.b16 %v861
  %v906 = vunpack.c.h.b16 %v861
  %v907 = vunpack.c.l.b16 %v862
  %v908 = vunpack.c.h.b16 %v862
  %v909 = vunpack.c.l.b16 %v863
  %v910 = vunpack.c.h.b16 %v863
  %v911 = vunpack.c.l.b16 %v864
  %v912 = vunpack.c.h.b16 %v864
  %v913 = vpack.c.b16 %v881, %v881
  %v914 = vpack.c.b16 %v882, %v882
  %v915 = vpack.c.b16 %v883, %v883
  %v916 = vpack.c.b16 %v884, %v884
  %v917 = vpack.c.b16 %v885, %v885
  %v918 = vpack.c.b16 %v886, %v886
  %v919 = vpack.c.b16 %v887, %v887
  %v920 = vpack.c.b16 %v888, %v888
  %v921 = vpack.c.b16 %v889, %v889
  %v922 = vpack.c.b16 %v890, %v890
  %v923 = vpack.c.b16 %v891, %v891
  %v924 = vpack.c.b16 %v892, %v892
  %v925 = vpack.c.b16 %v893, %v893
  %v926 = vpack.c.b16 %v894, %v894
  %v927 = vpack.c.b16 %v895, %v895
  %v928 = vpack.c.b16 %v896, %v896
  %v929 = vpack.c.b16 %v897, %v897
  %v930 = vpack.c.b16 %v898, %v898
  %v931 = vpack.c.b16 %v899, %v899
  %v932 = vpack.c.b16 %v900, %v900
  %v933 = vpack.c.b16 %v901, %v901
  %v934 = vpack.c.b16 %v902, %v902
  %v935 = vpack.c.b16 %v903, %v903
  %v936 = vpack.c.b16 %v904, %v904
  %v937 = vpack.c.b16 %v905, %v905
  %v938 = vpack.c.b16 %v906, %v906
  %v939 = vpack.c.b16 %v907, %v907
  %v940 = vpack.c.b16 %v908, %v908
  %v941 = vpack.c.b16 %v909, %v909
  %v942 = vpack.c.b16 %v910, %v910
  %v943 = vpack.c.b16 %v911, %v911
  %v944 = vpack.c.b16 %v912, %v912
  %vm977 = vcmask 257024
  %978 = vst.msk [vmem:[%s9] sm:$0xf] %vm977, %v913
  %979 = vst.msk [vmem:[%s9 + $0x4] sm:$0xf] %vm977, %v914
  %980 = vst.msk [vmem:[%s9 + $0x8] sm:$0xf] %vm977, %v915
  %981 = vst.msk [vmem:[%s9 + $0xc] sm:$0xf] %vm977, %v916
  %982 = vst.msk [vmem:[%s9 + $0x10] sm:$0xf] %vm977, %v917
  %983 = vst.msk [vmem:[%s9 + $0x14] sm:$0xf] %vm977, %v918
  %984 = vst.msk [vmem:[%s9 + $0x18] sm:$0xf] %vm977, %v919
  %985 = vst.msk [vmem:[%s9 + $0x1c] sm:$0xf] %vm977, %v920
  %986 = vst.msk [vmem:[%s9 + $0x20] sm:$0xf] %vm977, %v921
  %987 = vst.msk [vmem:[%s9 + $0x24] sm:$0xf] %vm977, %v922
  %988 = vst.msk [vmem:[%s9 + $0x28] sm:$0xf] %vm977, %v923
  %989 = vst.msk [vmem:[%s9 + $0x2c] sm:$0xf] %vm977, %v924
  %990 = vst.msk [vmem:[%s9 + $0x30] sm:$0xf] %vm977, %v925
  %991 = vst.msk [vmem:[%s9 + $0x34] sm:$0xf] %vm977, %v926
  %992 = vst.msk [vmem:[%s9 + $0x38] sm:$0xf] %vm977, %v927
  %993 = vst.msk [vmem:[%s9 + $0x3c] sm:$0xf] %vm977, %v928
  %994 = vst.msk [vmem:[%s9 + $0x40] sm:$0xf] %vm977, %v929
  %995 = vst.msk [vmem:[%s9 + $0x44] sm:$0xf] %vm977, %v930
  %996 = vst.msk [vmem:[%s9 + $0x48] sm:$0xf] %vm977, %v931
  %997 = vst.msk [vmem:[%s9 + $0x4c] sm:$0xf] %vm977, %v932
  %998 = vst.msk [vmem:[%s9 + $0x50] sm:$0xf] %vm977, %v933
  %999 = vst.msk [vmem:[%s9 + $0x54] sm:$0xf] %vm977, %v934
  %1000 = vst.msk [vmem:[%s9 + $0x58] sm:$0xf] %vm977, %v935
  %1001 = vst.msk [vmem:[%s9 + $0x5c] sm:$0xf] %vm977, %v936
  %1002 = vst.msk [vmem:[%s9 + $0x60] sm:$0xf] %vm977, %v937
  %1003 = vst.msk [vmem:[%s9 + $0x64] sm:$0xf] %vm977, %v938
  %1004 = vst.msk [vmem:[%s9 + $0x68] sm:$0xf] %vm977, %v939
  %1005 = vst.msk [vmem:[%s9 + $0x6c] sm:$0xf] %vm977, %v940
  %1006 = vst.msk [vmem:[%s9 + $0x70] sm:$0xf] %vm977, %v941
  %1007 = vst.msk [vmem:[%s9 + $0x74] sm:$0xf] %vm977, %v942
  %1008 = vst.msk [vmem:[%s9 + $0x78] sm:$0xf] %vm977, %v943
  %1009 = vst.msk [vmem:[%s9 + $0x7c] sm:$0xf] %vm977, %v944
  %v1010 = vld [vmem:[%s4] sm:$0xf]
  %v1011 = vld [vmem:[%s4 + $0x4] sm:$0xf]
  %v1012 = vld [vmem:[%s4 + $0x8] sm:$0xf]
  %v1013 = vld [vmem:[%s4 + $0xc] sm:$0xf]
  %v1014 = vld [vmem:[%s7] sm:$0x1]
  %v1016 = vlaneseq
  %v1017 = vshrl.u32 %v1016, 7
  %v1018 = vsub.s32 0, %v1017
  %v1019 = vrot.slane %v1014, %v1018
  %v1025 = vunpack.c.l.b16 %v1010
  %v1026 = vunpack.c.l.b16 %v1011
  %v1027 = vunpack.c.l.b16 %v1012
  %v1028 = vunpack.c.l.b16 %v1013
  %v1029 = vpack.c.b16 %v1026, %v1025
  %v1030 = vpack.c.b16 %v1028, %v1027
  %1033 = vmatprep.subr.bf16.mxu0 0
  %1034 = vmatpush1.bf16.msra.mxu0 %v1029
  %1035 = vmatprep.subr.bf16.mxu0 0
  %1036 = vmatpush1.bf16.msra.mxu0 %v1030
  %1037 = vmatprep.subr.bf16.mxu0 0
  %1038 = vmatpush1.bf16.msra.mxu0 0
  %1039 = vmatprep.subr.bf16.mxu0 0
  %1040 = vmatpush1.bf16.msra.mxu0 0
  %1041 = vmatprep.subr.bf16.mxu0 0
  %1042 = vmatpush1.bf16.msra.mxu0 0
  %1043 = vmatprep.subr.bf16.mxu0 0
  %1044 = vmatpush1.bf16.msra.mxu0 0
  %1045 = vmatprep.subr.bf16.mxu0 0
  %1046 = vmatpush1.bf16.msra.mxu0 0
  %1047 = vmatprep.subr.bf16.mxu0 0
  %1048 = vmatpush1.bf16.msra.mxu0 0
  %1049 = vmatprep.subr.bf16.mxu0 0
  %1050 = vmatpush1.bf16.msra.mxu0 0
  %1051 = vmatprep.subr.bf16.mxu0 0
  %1052 = vmatpush1.bf16.msra.mxu0 0
  %1053 = vmatprep.subr.bf16.mxu0 0
  %1054 = vmatpush1.bf16.msra.mxu0 0
  %1055 = vmatprep.subr.bf16.mxu0 0
  %1056 = vmatpush1.bf16.msra.mxu0 0
  %1057 = vmatprep.subr.bf16.mxu0 0
  %1058 = vmatpush1.bf16.msra.mxu0 0
  %1059 = vmatprep.subr.bf16.mxu0 0
  %1060 = vmatpush1.bf16.msra.mxu0 0
  %1061 = vmatprep.subr.bf16.mxu0 0
  %1062 = vmatpush1.bf16.msra.mxu0 0
  %1063 = vmatprep.subr.bf16.mxu0 0
  %1064 = vmatpush1.bf16.msra.mxu0 0
  %1065 = vmatprep.mubr.bf16.mxu0 0
  %1066 = vmatmul.mubr.bf16.gmra.mrb[0].mxu0 %v641
  %v1067 = vpop.f32.mrb[0].mxu0
  %v1068 = vadd.f32 %v1019, %v1067
  %v1069 = vpop.f32.mrb[0].mxu0
  %v1070 = vpop.f32.mrb[0].mxu0
  %v1071 = vadd.f32 %v1019, %v1070
  %v1072 = vpop.f32.mrb[0].mxu0
  %1073 = vmatprep.mubr.bf16.mxu0 0
  %1074 = vmatmul.mubr.bf16.gmra.mrb[0].mxu0 %v644
  %v1075 = vpop.f32.mrb[0].mxu0
  %v1076 = vadd.f32 %v1019, %v1075
  %v1077 = vpop.f32.mrb[0].mxu0
  %v1078 = vpop.f32.mrb[0].mxu0
  %v1079 = vadd.f32 %v1019, %v1078
  %v1080 = vpop.f32.mrb[0].mxu0
  %1081 = vmatprep.mubr.bf16.mxu0 0
  %1082 = vmatmul.mubr.bf16.gmra.mrb[0].mxu0 %v647
  %v1083 = vpop.f32.mrb[0].mxu0
  %v1084 = vadd.f32 %v1019, %v1083
  %v1085 = vpop.f32.mrb[0].mxu0
  %v1086 = vpop.f32.mrb[0].mxu0
  %v1087 = vadd.f32 %v1019, %v1086
  %v1088 = vpop.f32.mrb[0].mxu0
  %1089 = vmatprep.mubr.bf16.mxu0 0
  %1090 = vmatmul.mubr.bf16.gmra.mrb[0].mxu0 %v650
  %v1091 = vpop.f32.mrb[0].mxu0
  %v1092 = vadd.f32 %v1019, %v1091
  %v1093 = vpop.f32.mrb[0].mxu0
  %v1094 = vpop.f32.mrb[0].mxu0
  %v1095 = vadd.f32 %v1019, %v1094
  %v1096 = vpop.f32.mrb[0].mxu0
  %1097 = vmatprep.mubr.bf16.mxu0 0
  %1098 = vmatmul.mubr.bf16.gmra.mrb[0].mxu0 %v653
  %v1099 = vpop.f32.mrb[0].mxu0
  %v1100 = vadd.f32 %v1019, %v1099
  %v1101 = vpop.f32.mrb[0].mxu0
  %v1102 = vpop.f32.mrb[0].mxu0
  %v1103 = vadd.f32 %v1019, %v1102
  %v1104 = vpop.f32.mrb[0].mxu0
  %1105 = vmatprep.mubr.bf16.mxu0 0
  %1106 = vmatmul.mubr.bf16.gmra.mrb[0].mxu0 %v656
  %v1107 = vpop.f32.mrb[0].mxu0
  %v1108 = vadd.f32 %v1019, %v1107
  %v1109 = vpop.f32.mrb[0].mxu0
  %v1110 = vpop.f32.mrb[0].mxu0
  %v1111 = vadd.f32 %v1019, %v1110
  %v1112 = vpop.f32.mrb[0].mxu0
  %1113 = vmatprep.mubr.bf16.mxu0 0
  %1114 = vmatmul.mubr.bf16.gmra.mrb[0].mxu0 %v659
  %v1115 = vpop.f32.mrb[0].mxu0
  %v1116 = vadd.f32 %v1019, %v1115
  %v1117 = vpop.f32.mrb[0].mxu0
  %v1118 = vpop.f32.mrb[0].mxu0
  %v1119 = vadd.f32 %v1019, %v1118
  %v1120 = vpop.f32.mrb[0].mxu0
  %1121 = vmatprep.mubr.bf16.mxu0 0
  %1122 = vmatmul.mubr.bf16.gmra.mrb[0].mxu0 %v662
  %v1123 = vpop.f32.mrb[0].mxu0
  %v1124 = vadd.f32 %v1019, %v1123
  %v1125 = vpop.f32.mrb[0].mxu0
  %v1126 = vpop.f32.mrb[0].mxu0
  %v1127 = vadd.f32 %v1019, %v1126
  %v1128 = vpop.f32.mrb[0].mxu0
  %1129 = vmatprep.mubr.bf16.mxu0 0
  %1130 = vmatmul.mubr.bf16.gmra.mrb[0].mxu0 %v665
  %v1131 = vpop.f32.mrb[0].mxu0
  %v1132 = vadd.f32 %v1019, %v1131
  %v1133 = vpop.f32.mrb[0].mxu0
  %v1134 = vpop.f32.mrb[0].mxu0
  %v1135 = vadd.f32 %v1019, %v1134
  %v1136 = vpop.f32.mrb[0].mxu0
  %1137 = vmatprep.mubr.bf16.mxu0 0
  %1138 = vmatmul.mubr.bf16.gmra.mrb[0].mxu0 %v668
  %v1139 = vpop.f32.mrb[0].mxu0
  %v1140 = vadd.f32 %v1019, %v1139
  %v1141 = vpop.f32.mrb[0].mxu0
  %v1142 = vpop.f32.mrb[0].mxu0
  %v1143 = vadd.f32 %v1019, %v1142
  %v1144 = vpop.f32.mrb[0].mxu0
  %1145 = vmatprep.mubr.bf16.mxu0 0
  %1146 = vmatmul.mubr.bf16.gmra.mrb[0].mxu0 %v671
  %v1147 = vpop.f32.mrb[0].mxu0
  %v1148 = vadd.f32 %v1019, %v1147
  %v1149 = vpop.f32.mrb[0].mxu0
  %v1150 = vpop.f32.mrb[0].mxu0
  %v1151 = vadd.f32 %v1019, %v1150
  %v1152 = vpop.f32.mrb[0].mxu0
  %1153 = vmatprep.mubr.bf16.mxu0 0
  %1154 = vmatmul.mubr.bf16.gmra.mrb[0].mxu0 %v674
  %v1155 = vpop.f32.mrb[0].mxu0
  %v1156 = vadd.f32 %v1019, %v1155
  %v1157 = vpop.f32.mrb[0].mxu0
  %v1158 = vpop.f32.mrb[0].mxu0
  %v1159 = vadd.f32 %v1019, %v1158
  %v1160 = vpop.f32.mrb[0].mxu0
  %1161 = vmatprep.mubr.bf16.mxu0 0
  %1162 = vmatmul.mubr.bf16.gmra.mrb[0].mxu0 %v677
  %v1163 = vpop.f32.mrb[0].mxu0
  %v1164 = vadd.f32 %v1019, %v1163
  %v1165 = vpop.f32.mrb[0].mxu0
  %v1166 = vpop.f32.mrb[0].mxu0
  %v1167 = vadd.f32 %v1019, %v1166
  %v1168 = vpop.f32.mrb[0].mxu0
  %1169 = vmatprep.mubr.bf16.mxu0 0
  %1170 = vmatmul.mubr.bf16.gmra.mrb[0].mxu0 %v680
  %v1171 = vpop.f32.mrb[0].mxu0
  %v1172 = vadd.f32 %v1019, %v1171
  %v1173 = vpop.f32.mrb[0].mxu0
  %v1174 = vpop.f32.mrb[0].mxu0
  %v1175 = vadd.f32 %v1019, %v1174
  %v1176 = vpop.f32.mrb[0].mxu0
  %1177 = vmatprep.mubr.bf16.mxu0 0
  %1178 = vmatmul.mubr.bf16.gmra.mrb[0].mxu0 %v683
  %v1179 = vpop.f32.mrb[0].mxu0
  %v1180 = vadd.f32 %v1019, %v1179
  %v1181 = vpop.f32.mrb[0].mxu0
  %v1182 = vpop.f32.mrb[0].mxu0
  %v1183 = vadd.f32 %v1019, %v1182
  %v1184 = vpop.f32.mrb[0].mxu0
  %1185 = vmatprep.mubr.bf16.mxu0 0
  %1186 = vmatmul.mubr.bf16.gmra.mrb[0].mxu0 %v686
  %v1187 = vpop.f32.mrb[0].mxu0
  %v1188 = vadd.f32 %v1019, %v1187
  %v1189 = vpop.f32.mrb[0].mxu0
  %v1190 = vpop.f32.mrb[0].mxu0
  %v1191 = vadd.f32 %v1019, %v1190
  %v1192 = vpop.f32.mrb[0].mxu0
  %1193 = vdwg.mxu0
  %v1194 = vpack.c.bf16 %v1071, %v1068
  %v1195 = vpack.c.bf16 %v1079, %v1076
  %v1196 = vpack.c.bf16 %v1087, %v1084
  %v1197 = vpack.c.bf16 %v1095, %v1092
  %v1198 = vpack.c.bf16 %v1103, %v1100
  %v1199 = vpack.c.bf16 %v1111, %v1108
  %v1200 = vpack.c.bf16 %v1119, %v1116
  %v1201 = vpack.c.bf16 %v1127, %v1124
  %v1202 = vpack.c.bf16 %v1135, %v1132
  %v1203 = vpack.c.bf16 %v1143, %v1140
  %v1204 = vpack.c.bf16 %v1151, %v1148
  %v1205 = vpack.c.bf16 %v1159, %v1156
  %v1206 = vpack.c.bf16 %v1167, %v1164
  %v1207 = vpack.c.bf16 %v1175, %v1172
  %v1208 = vpack.c.bf16 %v1183, %v1180
  %v1209 = vpack.c.bf16 %v1191, %v1188
  %v1226 = vunpack.c.l.b16 %v1194
  %v1227 = vunpack.c.h.b16 %v1194
  %v1228 = vunpack.c.l.b16 %v1195
  %v1229 = vunpack.c.h.b16 %v1195
  %v1230 = vunpack.c.l.b16 %v1196
  %v1231 = vunpack.c.h.b16 %v1196
  %v1232 = vunpack.c.l.b16 %v1197
  %v1233 = vunpack.c.h.b16 %v1197
  %v1234 = vunpack.c.l.b16 %v1198
  %v1235 = vunpack.c.h.b16 %v1198
  %v1236 = vunpack.c.l.b16 %v1199
  %v1237 = vunpack.c.h.b16 %v1199
  %v1238 = vunpack.c.l.b16 %v1200
  %v1239 = vunpack.c.h.b16 %v1200
  %v1240 = vunpack.c.l.b16 %v1201
  %v1241 = vunpack.c.h.b16 %v1201
  %v1242 = vunpack.c.l.b16 %v1202
  %v1243 = vunpack.c.h.b16 %v1202
  %v1244 = vunpack.c.l.b16 %v1203
  %v1245 = vunpack.c.h.b16 %v1203
  %v1246 = vunpack.c.l.b16 %v1204
  %v1247 = vunpack.c.h.b16 %v1204
  %v1248 = vunpack.c.l.b16 %v1205
  %v1249 = vunpack.c.h.b16 %v1205
  %v1250 = vunpack.c.l.b16 %v1206
  %v1251 = vunpack.c.h.b16 %v1206
  %v1252 = vunpack.c.l.b16 %v1207
  %v1253 = vunpack.c.h.b16 %v1207
  %v1254 = vunpack.c.l.b16 %v1208
  %v1255 = vunpack.c.h.b16 %v1208
  %v1256 = vunpack.c.l.b16 %v1209
  %v1257 = vunpack.c.h.b16 %v1209
  %v1258 = vpack.c.b16 %v1226, %v1226
  %v1259 = vpack.c.b16 %v1227, %v1227
  %v1260 = vpack.c.b16 %v1228, %v1228
  %v1261 = vpack.c.b16 %v1229, %v1229
  %v1262 = vpack.c.b16 %v1230, %v1230
  %v1263 = vpack.c.b16 %v1231, %v1231
  %v1264 = vpack.c.b16 %v1232, %v1232
  %v1265 = vpack.c.b16 %v1233, %v1233
  %v1266 = vpack.c.b16 %v1234, %v1234
  %v1267 = vpack.c.b16 %v1235, %v1235
  %v1268 = vpack.c.b16 %v1236, %v1236
  %v1269 = vpack.c.b16 %v1237, %v1237
  %v1270 = vpack.c.b16 %v1238, %v1238
  %v1271 = vpack.c.b16 %v1239, %v1239
  %v1272 = vpack.c.b16 %v1240, %v1240
  %v1273 = vpack.c.b16 %v1241, %v1241
  %v1274 = vpack.c.b16 %v1242, %v1242
  %v1275 = vpack.c.b16 %v1243, %v1243
  %v1276 = vpack.c.b16 %v1244, %v1244
  %v1277 = vpack.c.b16 %v1245, %v1245
  %v1278 = vpack.c.b16 %v1246, %v1246
  %v1279 = vpack.c.b16 %v1247, %v1247
  %v1280 = vpack.c.b16 %v1248, %v1248
  %v1281 = vpack.c.b16 %v1249, %v1249
  %v1282 = vpack.c.b16 %v1250, %v1250
  %v1283 = vpack.c.b16 %v1251, %v1251
  %v1284 = vpack.c.b16 %v1252, %v1252
  %v1285 = vpack.c.b16 %v1253, %v1253
  %v1286 = vpack.c.b16 %v1254, %v1254
  %v1287 = vpack.c.b16 %v1255, %v1255
  %v1288 = vpack.c.b16 %v1256, %v1256
  %v1289 = vpack.c.b16 %v1257, %v1257
  %1322 = vst.msk [vmem:[%s10] sm:$0xf] %vm977, %v1258
  %1323 = vst.msk [vmem:[%s10 + $0x4] sm:$0xf] %vm977, %v1259
  %1324 = vst.msk [vmem:[%s10 + $0x8] sm:$0xf] %vm977, %v1260
  %1325 = vst.msk [vmem:[%s10 + $0xc] sm:$0xf] %vm977, %v1261
  %1326 = vst.msk [vmem:[%s10 + $0x10] sm:$0xf] %vm977, %v1262
  %1327 = vst.msk [vmem:[%s10 + $0x14] sm:$0xf] %vm977, %v1263
  %1328 = vst.msk [vmem:[%s10 + $0x18] sm:$0xf] %vm977, %v1264
  %1329 = vst.msk [vmem:[%s10 + $0x1c] sm:$0xf] %vm977, %v1265
  %1330 = vst.msk [vmem:[%s10 + $0x20] sm:$0xf] %vm977, %v1266
  %1331 = vst.msk [vmem:[%s10 + $0x24] sm:$0xf] %vm977, %v1267
  %1332 = vst.msk [vmem:[%s10 + $0x28] sm:$0xf] %vm977, %v1268
  %1333 = vst.msk [vmem:[%s10 + $0x2c] sm:$0xf] %vm977, %v1269
  %1334 = vst.msk [vmem:[%s10 + $0x30] sm:$0xf] %vm977, %v1270
  %1335 = vst.msk [vmem:[%s10 + $0x34] sm:$0xf] %vm977, %v1271
  %1336 = vst.msk [vmem:[%s10 + $0x38] sm:$0xf] %vm977, %v1272
  %1337 = vst.msk [vmem:[%s10 + $0x3c] sm:$0xf] %vm977, %v1273
  %1338 = vst.msk [vmem:[%s10 + $0x40] sm:$0xf] %vm977, %v1274
  %1339 = vst.msk [vmem:[%s10 + $0x44] sm:$0xf] %vm977, %v1275
  %1340 = vst.msk [vmem:[%s10 + $0x48] sm:$0xf] %vm977, %v1276
  %1341 = vst.msk [vmem:[%s10 + $0x4c] sm:$0xf] %vm977, %v1277
  %1342 = vst.msk [vmem:[%s10 + $0x50] sm:$0xf] %vm977, %v1278
  %1343 = vst.msk [vmem:[%s10 + $0x54] sm:$0xf] %vm977, %v1279
  %1344 = vst.msk [vmem:[%s10 + $0x58] sm:$0xf] %vm977, %v1280
  %1345 = vst.msk [vmem:[%s10 + $0x5c] sm:$0xf] %vm977, %v1281
  %1346 = vst.msk [vmem:[%s10 + $0x60] sm:$0xf] %vm977, %v1282
  %1347 = vst.msk [vmem:[%s10 + $0x64] sm:$0xf] %vm977, %v1283
  %1348 = vst.msk [vmem:[%s10 + $0x68] sm:$0xf] %vm977, %v1284
  %1349 = vst.msk [vmem:[%s10 + $0x6c] sm:$0xf] %vm977, %v1285
  %1350 = vst.msk [vmem:[%s10 + $0x70] sm:$0xf] %vm977, %v1286
  %1351 = vst.msk [vmem:[%s10 + $0x74] sm:$0xf] %vm977, %v1287
  %1352 = vst.msk [vmem:[%s10 + $0x78] sm:$0xf] %vm977, %v1288
  %1353 = vst.msk [vmem:[%s10 + $0x7c] sm:$0xf] %vm977, %v1289
  %v1354 = vld [vmem:[%s5] sm:$0xf]
  %v1355 = vld [vmem:[%s5 + $0x4] sm:$0xf]
  %v1356 = vld [vmem:[%s5 + $0x8] sm:$0xf]
  %v1357 = vld [vmem:[%s5 + $0xc] sm:$0xf]
  %v1358 = vld [vmem:[%s8] sm:$0x1]
  %v1360 = vlaneseq
  %v1361 = vshrl.u32 %v1360, 7
  %v1362 = vsub.s32 0, %v1361
  %v1363 = vrot.slane %v1358, %v1362
  %v1369 = vunpack.c.l.b16 %v1354
  %v1370 = vunpack.c.l.b16 %v1355
  %v1371 = vunpack.c.l.b16 %v1356
  %v1372 = vunpack.c.l.b16 %v1357
  %v1373 = vpack.c.b16 %v1370, %v1369
  %v1374 = vpack.c.b16 %v1372, %v1371
  %1377 = vmatprep.subr.bf16.mxu0 0
  %1378 = vmatpush1.bf16.msra.mxu0 %v1373
  %1379 = vmatprep.subr.bf16.mxu0 0
  %1380 = vmatpush1.bf16.msra.mxu0 %v1374
  %1381 = vmatprep.subr.bf16.mxu0 0
  %1382 = vmatpush1.bf16.msra.mxu0 0
  %1383 = vmatprep.subr.bf16.mxu0 0
  %1384 = vmatpush1.bf16.msra.mxu0 0
  %1385 = vmatprep.subr.bf16.mxu0 0
  %1386 = vmatpush1.bf16.msra.mxu0 0
  %1387 = vmatprep.subr.bf16.mxu0 0
  %1388 = vmatpush1.bf16.msra.mxu0 0
  %1389 = vmatprep.subr.bf16.mxu0 0
  %1390 = vmatpush1.bf16.msra.mxu0 0
  %1391 = vmatprep.subr.bf16.mxu0 0
  %1392 = vmatpush1.bf16.msra.mxu0 0
  %1393 = vmatprep.subr.bf16.mxu0 0
  %1394 = vmatpush1.bf16.msra.mxu0 0
  %1395 = vmatprep.subr.bf16.mxu0 0
  %1396 = vmatpush1.bf16.msra.mxu0 0
  %1397 = vmatprep.subr.bf16.mxu0 0
  %1398 = vmatpush1.bf16.msra.mxu0 0
  %1399 = vmatprep.subr.bf16.mxu0 0
  %1400 = vmatpush1.bf16.msra.mxu0 0
  %1401 = vmatprep.subr.bf16.mxu0 0
  %1402 = vmatpush1.bf16.msra.mxu0 0
  %1403 = vmatprep.subr.bf16.mxu0 0
  %1404 = vmatpush1.bf16.msra.mxu0 0
  %1405 = vmatprep.subr.bf16.mxu0 0
  %1406 = vmatpush1.bf16.msra.mxu0 0
  %1407 = vmatprep.subr.bf16.mxu0 0
  %1408 = vmatpush1.bf16.msra.mxu0 0
  %1409 = vmatprep.mubr.bf16.mxu0 0
  %1410 = vmatmul.mubr.bf16.gmra.mrb[0].mxu0 %v641
  %v1411 = vpop.f32.mrb[0].mxu0
  %v1412 = vadd.f32 %v1363, %v1411
  %v1413 = vpop.f32.mrb[0].mxu0
  %v1414 = vpop.f32.mrb[0].mxu0
  %v1415 = vadd.f32 %v1363, %v1414
  %v1416 = vpop.f32.mrb[0].mxu0
  %1417 = vmatprep.mubr.bf16.mxu0 0
  %1418 = vmatmul.mubr.bf16.gmra.mrb[0].mxu0 %v644
  %v1419 = vpop.f32.mrb[0].mxu0
  %v1420 = vadd.f32 %v1363, %v1419
  %v1421 = vpop.f32.mrb[0].mxu0
  %v1422 = vpop.f32.mrb[0].mxu0
  %v1423 = vadd.f32 %v1363, %v1422
  %v1424 = vpop.f32.mrb[0].mxu0
  %1425 = vmatprep.mubr.bf16.mxu0 0
  %1426 = vmatmul.mubr.bf16.gmra.mrb[0].mxu0 %v647
  %v1427 = vpop.f32.mrb[0].mxu0
  %v1428 = vadd.f32 %v1363, %v1427
  %v1429 = vpop.f32.mrb[0].mxu0
  %v1430 = vpop.f32.mrb[0].mxu0
  %v1431 = vadd.f32 %v1363, %v1430
  %v1432 = vpop.f32.mrb[0].mxu0
  %1433 = vmatprep.mubr.bf16.mxu0 0
  %1434 = vmatmul.mubr.bf16.gmra.mrb[0].mxu0 %v650
  %v1435 = vpop.f32.mrb[0].mxu0
  %v1436 = vadd.f32 %v1363, %v1435
  %v1437 = vpop.f32.mrb[0].mxu0
  %v1438 = vpop.f32.mrb[0].mxu0
  %v1439 = vadd.f32 %v1363, %v1438
  %v1440 = vpop.f32.mrb[0].mxu0
  %1441 = vmatprep.mubr.bf16.mxu0 0
  %1442 = vmatmul.mubr.bf16.gmra.mrb[0].mxu0 %v653
  %v1443 = vpop.f32.mrb[0].mxu0
  %v1444 = vadd.f32 %v1363, %v1443
  %v1445 = vpop.f32.mrb[0].mxu0
  %v1446 = vpop.f32.mrb[0].mxu0
  %v1447 = vadd.f32 %v1363, %v1446
  %v1448 = vpop.f32.mrb[0].mxu0
  %1449 = vmatprep.mubr.bf16.mxu0 0
  %1450 = vmatmul.mubr.bf16.gmra.mrb[0].mxu0 %v656
  %v1451 = vpop.f32.mrb[0].mxu0
  %v1452 = vadd.f32 %v1363, %v1451
  %v1453 = vpop.f32.mrb[0].mxu0
  %v1454 = vpop.f32.mrb[0].mxu0
  %v1455 = vadd.f32 %v1363, %v1454
  %v1456 = vpop.f32.mrb[0].mxu0
  %1457 = vmatprep.mubr.bf16.mxu0 0
  %1458 = vmatmul.mubr.bf16.gmra.mrb[0].mxu0 %v659
  %v1459 = vpop.f32.mrb[0].mxu0
  %v1460 = vadd.f32 %v1363, %v1459
  %v1461 = vpop.f32.mrb[0].mxu0
  %v1462 = vpop.f32.mrb[0].mxu0
  %v1463 = vadd.f32 %v1363, %v1462
  %v1464 = vpop.f32.mrb[0].mxu0
  %1465 = vmatprep.mubr.bf16.mxu0 0
  %1466 = vmatmul.mubr.bf16.gmra.mrb[0].mxu0 %v662
  %v1467 = vpop.f32.mrb[0].mxu0
  %v1468 = vadd.f32 %v1363, %v1467
  %v1469 = vpop.f32.mrb[0].mxu0
  %v1470 = vpop.f32.mrb[0].mxu0
  %v1471 = vadd.f32 %v1363, %v1470
  %v1472 = vpop.f32.mrb[0].mxu0
  %1473 = vmatprep.mubr.bf16.mxu0 0
  %1474 = vmatmul.mubr.bf16.gmra.mrb[0].mxu0 %v665
  %v1475 = vpop.f32.mrb[0].mxu0
  %v1476 = vadd.f32 %v1363, %v1475
  %v1477 = vpop.f32.mrb[0].mxu0
  %v1478 = vpop.f32.mrb[0].mxu0
  %v1479 = vadd.f32 %v1363, %v1478
  %v1480 = vpop.f32.mrb[0].mxu0
  %1481 = vmatprep.mubr.bf16.mxu0 0
  %1482 = vmatmul.mubr.bf16.gmra.mrb[0].mxu0 %v668
  %v1483 = vpop.f32.mrb[0].mxu0
  %v1484 = vadd.f32 %v1363, %v1483
  %v1485 = vpop.f32.mrb[0].mxu0
  %v1486 = vpop.f32.mrb[0].mxu0
  %v1487 = vadd.f32 %v1363, %v1486
  %v1488 = vpop.f32.mrb[0].mxu0
  %1489 = vmatprep.mubr.bf16.mxu0 0
  %1490 = vmatmul.mubr.bf16.gmra.mrb[0].mxu0 %v671
  %v1491 = vpop.f32.mrb[0].mxu0
  %v1492 = vadd.f32 %v1363, %v1491
  %v1493 = vpop.f32.mrb[0].mxu0
  %v1494 = vpop.f32.mrb[0].mxu0
  %v1495 = vadd.f32 %v1363, %v1494
  %v1496 = vpop.f32.mrb[0].mxu0
  %1497 = vmatprep.mubr.bf16.mxu0 0
  %1498 = vmatmul.mubr.bf16.gmra.mrb[0].mxu0 %v674
  %v1499 = vpop.f32.mrb[0].mxu0
  %v1500 = vadd.f32 %v1363, %v1499
  %v1501 = vpop.f32.mrb[0].mxu0
  %v1502 = vpop.f32.mrb[0].mxu0
  %v1503 = vadd.f32 %v1363, %v1502
  %v1504 = vpop.f32.mrb[0].mxu0
  %1505 = vmatprep.mubr.bf16.mxu0 0
  %1506 = vmatmul.mubr.bf16.gmra.mrb[0].mxu0 %v677
  %v1507 = vpop.f32.mrb[0].mxu0
  %v1508 = vadd.f32 %v1363, %v1507
  %v1509 = vpop.f32.mrb[0].mxu0
  %v1510 = vpop.f32.mrb[0].mxu0
  %v1511 = vadd.f32 %v1363, %v1510
  %v1512 = vpop.f32.mrb[0].mxu0
  %1513 = vmatprep.mubr.bf16.mxu0 0
  %1514 = vmatmul.mubr.bf16.gmra.mrb[0].mxu0 %v680
  %v1515 = vpop.f32.mrb[0].mxu0
  %v1516 = vadd.f32 %v1363, %v1515
  %v1517 = vpop.f32.mrb[0].mxu0
  %v1518 = vpop.f32.mrb[0].mxu0
  %v1519 = vadd.f32 %v1363, %v1518
  %v1520 = vpop.f32.mrb[0].mxu0
  %1521 = vmatprep.mubr.bf16.mxu0 0
  %1522 = vmatmul.mubr.bf16.gmra.mrb[0].mxu0 %v683
  %v1523 = vpop.f32.mrb[0].mxu0
  %v1524 = vadd.f32 %v1363, %v1523
  %v1525 = vpop.f32.mrb[0].mxu0
  %v1526 = vpop.f32.mrb[0].mxu0
  %v1527 = vadd.f32 %v1363, %v1526
  %v1528 = vpop.f32.mrb[0].mxu0
  %1529 = vmatprep.mubr.bf16.mxu0 0
  %1530 = vmatmul.mubr.bf16.gmra.mrb[0].mxu0 %v686
  %v1531 = vpop.f32.mrb[0].mxu0
  %v1532 = vadd.f32 %v1363, %v1531
  %v1533 = vpop.f32.mrb[0].mxu0
  %v1534 = vpop.f32.mrb[0].mxu0
  %v1535 = vadd.f32 %v1363, %v1534
  %v1536 = vpop.f32.mrb[0].mxu0
  %1537 = vdwg.mxu0
  %v1538 = vpack.c.bf16 %v1415, %v1412
  %v1539 = vpack.c.bf16 %v1423, %v1420
  %v1540 = vpack.c.bf16 %v1431, %v1428
  %v1541 = vpack.c.bf16 %v1439, %v1436
  %v1542 = vpack.c.bf16 %v1447, %v1444
  %v1543 = vpack.c.bf16 %v1455, %v1452
  %v1544 = vpack.c.bf16 %v1463, %v1460
  %v1545 = vpack.c.bf16 %v1471, %v1468
  %v1546 = vpack.c.bf16 %v1479, %v1476
  %v1547 = vpack.c.bf16 %v1487, %v1484
  %v1548 = vpack.c.bf16 %v1495, %v1492
  %v1549 = vpack.c.bf16 %v1503, %v1500
  %v1550 = vpack.c.bf16 %v1511, %v1508
  %v1551 = vpack.c.bf16 %v1519, %v1516
  %v1552 = vpack.c.bf16 %v1527, %v1524
  %v1553 = vpack.c.bf16 %v1535, %v1532
  %v1570 = vunpack.c.l.b16 %v1538
  %v1571 = vunpack.c.h.b16 %v1538
  %v1572 = vunpack.c.l.b16 %v1539
  %v1573 = vunpack.c.h.b16 %v1539
  %v1574 = vunpack.c.l.b16 %v1540
  %v1575 = vunpack.c.h.b16 %v1540
  %v1576 = vunpack.c.l.b16 %v1541
  %v1577 = vunpack.c.h.b16 %v1541
  %v1578 = vunpack.c.l.b16 %v1542
  %v1579 = vunpack.c.h.b16 %v1542
  %v1580 = vunpack.c.l.b16 %v1543
  %v1581 = vunpack.c.h.b16 %v1543
  %v1582 = vunpack.c.l.b16 %v1544
  %v1583 = vunpack.c.h.b16 %v1544
  %v1584 = vunpack.c.l.b16 %v1545
  %v1585 = vunpack.c.h.b16 %v1545
  %v1586 = vunpack.c.l.b16 %v1546
  %v1587 = vunpack.c.h.b16 %v1546
  %v1588 = vunpack.c.l.b16 %v1547
  %v1589 = vunpack.c.h.b16 %v1547
  %v1590 = vunpack.c.l.b16 %v1548
  %v1591 = vunpack.c.h.b16 %v1548
  %v1592 = vunpack.c.l.b16 %v1549
  %v1593 = vunpack.c.h.b16 %v1549
  %v1594 = vunpack.c.l.b16 %v1550
  %v1595 = vunpack.c.h.b16 %v1550
  %v1596 = vunpack.c.l.b16 %v1551
  %v1597 = vunpack.c.h.b16 %v1551
  %v1598 = vunpack.c.l.b16 %v1552
  %v1599 = vunpack.c.h.b16 %v1552
  %v1600 = vunpack.c.l.b16 %v1553
  %v1601 = vunpack.c.h.b16 %v1553
  %v1602 = vpack.c.b16 %v1570, %v1570
  %v1603 = vpack.c.b16 %v1571, %v1571
  %v1604 = vpack.c.b16 %v1572, %v1572
  %v1605 = vpack.c.b16 %v1573, %v1573
  %v1606 = vpack.c.b16 %v1574, %v1574
  %v1607 = vpack.c.b16 %v1575, %v1575
  %v1608 = vpack.c.b16 %v1576, %v1576
  %v1609 = vpack.c.b16 %v1577, %v1577
  %v1610 = vpack.c.b16 %v1578, %v1578
  %v1611 = vpack.c.b16 %v1579, %v1579
  %v1612 = vpack.c.b16 %v1580, %v1580
  %v1613 = vpack.c.b16 %v1581, %v1581
  %v1614 = vpack.c.b16 %v1582, %v1582
  %v1615 = vpack.c.b16 %v1583, %v1583
  %v1616 = vpack.c.b16 %v1584, %v1584
  %v1617 = vpack.c.b16 %v1585, %v1585
  %v1618 = vpack.c.b16 %v1586, %v1586
  %v1619 = vpack.c.b16 %v1587, %v1587
  %v1620 = vpack.c.b16 %v1588, %v1588
  %v1621 = vpack.c.b16 %v1589, %v1589
  %v1622 = vpack.c.b16 %v1590, %v1590
  %v1623 = vpack.c.b16 %v1591, %v1591
  %v1624 = vpack.c.b16 %v1592, %v1592
  %v1625 = vpack.c.b16 %v1593, %v1593
  %v1626 = vpack.c.b16 %v1594, %v1594
  %v1627 = vpack.c.b16 %v1595, %v1595
  %v1628 = vpack.c.b16 %v1596, %v1596
  %v1629 = vpack.c.b16 %v1597, %v1597
  %v1630 = vpack.c.b16 %v1598, %v1598
  %v1631 = vpack.c.b16 %v1599, %v1599
  %v1632 = vpack.c.b16 %v1600, %v1600
  %v1633 = vpack.c.b16 %v1601, %v1601
  %1666 = vst.msk [vmem:[%s11] sm:$0xf] %vm977, %v1602
  %1667 = vst.msk [vmem:[%s11 + $0x4] sm:$0xf] %vm977, %v1603
  %1668 = vst.msk [vmem:[%s11 + $0x8] sm:$0xf] %vm977, %v1604
  %1669 = vst.msk [vmem:[%s11 + $0xc] sm:$0xf] %vm977, %v1605
  %1670 = vst.msk [vmem:[%s11 + $0x10] sm:$0xf] %vm977, %v1606
  %1671 = vst.msk [vmem:[%s11 + $0x14] sm:$0xf] %vm977, %v1607
  %1672 = vst.msk [vmem:[%s11 + $0x18] sm:$0xf] %vm977, %v1608
  %1673 = vst.msk [vmem:[%s11 + $0x1c] sm:$0xf] %vm977, %v1609
  %1674 = vst.msk [vmem:[%s11 + $0x20] sm:$0xf] %vm977, %v1610
  %1675 = vst.msk [vmem:[%s11 + $0x24] sm:$0xf] %vm977, %v1611
  %1676 = vst.msk [vmem:[%s11 + $0x28] sm:$0xf] %vm977, %v1612
  %1677 = vst.msk [vmem:[%s11 + $0x2c] sm:$0xf] %vm977, %v1613
  %1678 = vst.msk [vmem:[%s11 + $0x30] sm:$0xf] %vm977, %v1614
  %1679 = vst.msk [vmem:[%s11 + $0x34] sm:$0xf] %vm977, %v1615
  %1680 = vst.msk [vmem:[%s11 + $0x38] sm:$0xf] %vm977, %v1616
  %1681 = vst.msk [vmem:[%s11 + $0x3c] sm:$0xf] %vm977, %v1617
  %1682 = vst.msk [vmem:[%s11 + $0x40] sm:$0xf] %vm977, %v1618
  %1683 = vst.msk [vmem:[%s11 + $0x44] sm:$0xf] %vm977, %v1619
  %1684 = vst.msk [vmem:[%s11 + $0x48] sm:$0xf] %vm977, %v1620
  %1685 = vst.msk [vmem:[%s11 + $0x4c] sm:$0xf] %vm977, %v1621
  %1686 = vst.msk [vmem:[%s11 + $0x50] sm:$0xf] %vm977, %v1622
  %1687 = vst.msk [vmem:[%s11 + $0x54] sm:$0xf] %vm977, %v1623
  %1688 = vst.msk [vmem:[%s11 + $0x58] sm:$0xf] %vm977, %v1624
  %1689 = vst.msk [vmem:[%s11 + $0x5c] sm:$0xf] %vm977, %v1625
  %1690 = vst.msk [vmem:[%s11 + $0x60] sm:$0xf] %vm977, %v1626
  %1691 = vst.msk [vmem:[%s11 + $0x64] sm:$0xf] %vm977, %v1627
  %1692 = vst.msk [vmem:[%s11 + $0x68] sm:$0xf] %vm977, %v1628
  %1693 = vst.msk [vmem:[%s11 + $0x6c] sm:$0xf] %vm977, %v1629
  %1694 = vst.msk [vmem:[%s11 + $0x70] sm:$0xf] %vm977, %v1630
  %1695 = vst.msk [vmem:[%s11 + $0x74] sm:$0xf] %vm977, %v1631
  %1696 = vst.msk [vmem:[%s11 + $0x78] sm:$0xf] %vm977, %v1632
  %1697 = vst.msk [vmem:[%s11 + $0x7c] sm:$0xf] %vm977, %v1633
  // Predicated region
  $region42: #{tpu_custom_call.1} parent=0 // pred_check
    _
  $region43: #{tpu_custom_call.1} parent=0 // pred_check_branch
    %1699 = sbr.rel (0) target = $region45
  $region44: #{tpu_custom_call.1} parent=0 // pred_region
    _
  $region45: #{tpu_custom_call.1} parent=0 // pred_fallthru
    _
  // Predicated region
  $region46: #{tpu_custom_call.1} parent=0 // pred_check
    _
  $region47: #{tpu_custom_call.1} parent=0 // pred_check_branch
    %1701 = sbr.rel (0) target = $region49
  $region48: #{tpu_custom_call.1} parent=0 // pred_region
    _
  $region49: #{tpu_custom_call.1} parent=0 // pred_fallthru
    _
  // Predicated region
  $region50: #{tpu_custom_call.1} parent=0 // pred_check
    _
  $region51: #{tpu_custom_call.1} parent=0 // pred_check_branch
    %1703 = sbr.rel (0) target = $region53
  $region52: #{tpu_custom_call.1} parent=0 // pred_region
    _
  $region53: #{tpu_custom_call.1} parent=0 // pred_fallthru
    _
  // Predicated region
  $region54: #{tpu_custom_call.1} parent=0 // pred_check
    _
  $region55: #{tpu_custom_call.1} parent=0 // pred_check_branch
    %1705 = sbr.rel (0) target = $region57
  $region56: #{tpu_custom_call.1} parent=0 // pred_region
    _
  $region57: #{tpu_custom_call.1} parent=0 // pred_fallthru
    _
  // Predicated region
  $region58: #{tpu_custom_call.1} parent=0 // pred_check
    _
  $region59: #{tpu_custom_call.1} parent=0 // pred_check_branch
    %1707 = sbr.rel (0) target = $region61
  $region60: #{tpu_custom_call.1} parent=0 // pred_region
    _
  $region61: #{tpu_custom_call.1} parent=0 // pred_fallthru
    _
  // Predicated region
  $region62: #{tpu_custom_call.1} parent=0 // pred_check
    _
  $region63: #{tpu_custom_call.1} parent=0 // pred_check_branch
    %1709 = sbr.rel (0) target = $region65
  $region64: #{tpu_custom_call.1} parent=0 // pred_region
    _
  $region65: #{tpu_custom_call.1} parent=0 // pred_fallthru
    _

</llo_original>
